<compile_context>
chip_gen: v7x
topology: tpu7x:2x2x1
jax: 0.10.0
libtpu: 0.0.40
codegen_flags: <defaults>
</compile_context>

<pallas_src>
import jax
import jax.numpy as jnp
from jax import lax
from jax.experimental import pallas as pl
from jax.experimental.pallas import tpu as pltpu

INPUT_SIZE = 3
HIDDEN_SIZE = 20
OUTPUT_SIZE = 16

GP = 128          # per-gate lane padding (one full vreg lane width per gate)
HC = 32           # padded contraction width for the h->gates and h->readout dots
NGATES = 4        # gate block order [i, f, g, o] == PyTorch LSTMCell stacked order
# 0.5 pre-scale on i/f/o pre-activations so sigmoid(x) = 0.5*tanh(x/2) + 0.5.
_GATE_SCALE = (0.5, 0.5, 1.0, 0.5)


def _lstm_summarize_kernel(x_ref, w_ih_ref, w_hh_ref, b_ref,
                           lin_w_ref, lin_b_ref, out_ref, xproj_ref):
    T = x_ref.shape[0]

    # Input projection + fused bias for all T steps in one MXU matmul, hoisted
    # off the serial recurrence.  i/f/o columns of w_ih/b are pre-scaled by 0.5.
    xproj_ref[...] = (
        jnp.dot(x_ref[...], w_ih_ref[...], preferred_element_type=jnp.float32)
        + b_ref[...])

    # Hoist the (loop-invariant) recurrent-weight read out of the loop body.
    w_hh = w_hh_ref[...]                                         # (HC, 4*GP)

    def step(t, carry):
        h, c = carry                                             # (1, GP) each
        # Lane-prefix slice of h; lanes 20..HC-1 are provably zero, matching the
        # zero rows 20..HC-1 of the packed W_hh.
        gates = xproj_ref[pl.ds(t, 1), :] + jnp.dot(
            h[:, :HC], w_hh, preferred_element_type=jnp.float32)  # (1, 4*GP)
        # One EUP pass over the whole gate slab; reconstruct sigmoid for i/f/o
        # with a cheap VPU affine (the 0.5 pre-scale lives in the packed weights).
        y = jnp.tanh(gates)
        i_g = 0.5 * y[:, 0 * GP:1 * GP] + 0.5
        f_g = 0.5 * y[:, 1 * GP:2 * GP] + 0.5
        g_g = y[:, 2 * GP:3 * GP]
        o_g = 0.5 * y[:, 3 * GP:4 * GP] + 0.5
        c_new = f_g * c + i_g * g_g
        h_new = o_g * jnp.tanh(c_new)
        return h_new, c_new

    h0 = jnp.zeros((1, GP), jnp.float32)
    c0 = jnp.zeros((1, GP), jnp.float32)
    # T is a compile-time constant -> fully unroll the recurrence.
    h_T, _ = lax.fori_loop(0, T, step, (h0, c0), unroll=True)

    logits = jnp.dot(h_T[:, :HC], lin_w_ref[...],
                     preferred_element_type=jnp.float32) + lin_b_ref[...]
    out_ref[...] = jax.nn.sigmoid(logits)


def _pack_gates(w_t):
    """(in_dim, 4H) in PyTorch [i,f,g,o] order -> (in_dim, 4*GP): each gate block
    128-lane aligned, i/f/o blocks pre-scaled by 0.5, padding lanes zero."""
    in_dim = w_t.shape[0]
    out = jnp.zeros((in_dim, NGATES * GP), jnp.float32)
    for g in range(NGATES):
        blk = w_t[:, g * HIDDEN_SIZE:(g + 1) * HIDDEN_SIZE] * _GATE_SCALE[g]
        out = out.at[:, g * GP:g * GP + HIDDEN_SIZE].set(blk)
    return out


def pack_params(params):
    """One-time weight preprocessing.  Call ONCE at init, not per forward call."""
    w_ih_t = jnp.transpose(params["w_ih"]).astype(jnp.float32)    # (3, 80)
    w_hh_t = jnp.transpose(params["w_hh"]).astype(jnp.float32)    # (20, 80)
    bias = (params["b_ih"] + params["b_hh"]).reshape(1, -1).astype(jnp.float32)
    lin_w_t = jnp.transpose(params["lin_w"]).astype(jnp.float32)  # (20, 16)

    w_hh_p = jnp.zeros((HC, NGATES * GP), jnp.float32)
    w_hh_p = w_hh_p.at[:HIDDEN_SIZE, :].set(_pack_gates(w_hh_t))  # (32, 512)
    lin_w_p = jnp.zeros((HC, OUTPUT_SIZE), jnp.float32)
    lin_w_p = lin_w_p.at[:HIDDEN_SIZE, :].set(lin_w_t)            # (32, 16)
    return {
        "w_ih_p": _pack_gates(w_ih_t),                            # (3, 512)
        "w_hh_p": w_hh_p,                                         # (32, 512)
        "b_p": _pack_gates(bias),                                 # (1, 512)
        "lin_w_p": lin_w_p,                                       # (32, 16)
        "lin_b": params["lin_b"].reshape(1, -1).astype(jnp.float32),  # (1, 16)
    }


def layer_summarize_net(x, packed):
    """x: (T, 3) float32 (time-major, batch=1, as in the torch forward).
    `packed`: output of pack_params().  Returns (1, 16) float32."""
    T = x.shape[0]
    vmem = pl.BlockSpec(memory_space=pltpu.MemorySpace.VMEM)
    return pl.pallas_call(
        _lstm_summarize_kernel,
        out_shape=jax.ShapeDtypeStruct((1, OUTPUT_SIZE), jnp.float32),
        in_specs=[vmem] * 6,
        out_specs=vmem,
        scratch_shapes=[pltpu.VMEM((T, NGATES * GP), jnp.float32)],
    )(x.astype(jnp.float32), packed["w_ih_p"], packed["w_hh_p"],
      packed["b_p"], packed["lin_w_p"], packed["lin_b"])


def init_params(key):
    # Same shapes / init style as the PyTorch module (uniform(-1/sqrt(H), 1/sqrt(H))).
    k = jax.random.split(key, 6)
    bound = 1.0 / jnp.sqrt(jnp.float32(HIDDEN_SIZE))
    u = lambda kk, shape: jax.random.uniform(
        kk, shape, jnp.float32, minval=-bound, maxval=bound)
    return {
        "w_ih": u(k[0], (4 * HIDDEN_SIZE, INPUT_SIZE)),
        "w_hh": u(k[1], (4 * HIDDEN_SIZE, HIDDEN_SIZE)),
        "b_ih": u(k[2], (4 * HIDDEN_SIZE,)),
        "b_hh": u(k[3], (4 * HIDDEN_SIZE,)),
        "lin_w": u(k[4], (OUTPUT_SIZE, HIDDEN_SIZE)),
        "lin_b": u(k[5], (OUTPUT_SIZE,)),
    }


def _reference(x, params):
    """Pure-JAX reference of the PyTorch forward (gate order i,f,g,o)."""
    h = jnp.zeros((1, HIDDEN_SIZE), jnp.float32)
    c = jnp.zeros((1, HIDDEN_SIZE), jnp.float32)
    H = HIDDEN_SIZE
    for t in range(x.shape[0]):
        x_t = x[t:t + 1, :]
        gates = (x_t @ params["w_ih"].T + params["b_ih"]
                 + h @ params["w_hh"].T + params["b_hh"])
        i_g = jax.nn.sigmoid(gates[:, 0 * H:1 * H])
        f_g = jax.nn.sigmoid(gates[:, 1 * H:2 * H])
        g_g = jnp.tanh(gates[:, 2 * H:3 * H])
        o_g = jax.nn.sigmoid(gates[:, 3 * H:4 * H])
        c = f_g * c + i_g * g_g
        h = o_g * jnp.tanh(c)
    return jax.nn.sigmoid(h @ params["lin_w"].T + params["lin_b"])


if __name__ == "__main__":
    key = jax.random.PRNGKey(0)
    pkey, xkey = jax.random.split(key)
    params = init_params(pkey)
    packed = jax.block_until_ready(pack_params(params))  # one-time, off hot path

    T = 8  # sequence length; each time step is a (1, 3) "batch" as in torch
    x = jax.random.normal(xkey, (T, INPUT_SIZE), jnp.float32)

    out = layer_summarize_net(x, packed)
    out = jax.block_until_ready(out)

    ref = _reference(x, params)
    assert out.shape == (1, OUTPUT_SIZE)
    assert jnp.allclose(out, ref, atol=1e-5, rtol=1e-5)
    print("KERNEL_OK")
</pallas_src>

<mosaic_0001>
module attributes {stable_mosaic.version = 11 : i64} {
  func.func @_lstm_summarize_kernel(%arg0: memref<8x3xf32, #tpu.memory_space<vmem>>, %arg1: memref<3x512xf32, #tpu.memory_space<vmem>>, %arg2: memref<32x512xf32, #tpu.memory_space<vmem>>, %arg3: memref<1x512xf32, #tpu.memory_space<vmem>>, %arg4: memref<32x16xf32, #tpu.memory_space<vmem>>, %arg5: memref<1x16xf32, #tpu.memory_space<vmem>>, %arg6: memref<1x16xf32, #tpu.memory_space<vmem>>, %arg7: memref<8x512xf32, #tpu.memory_space<vmem>>) attributes {dimension_semantics = [], scalar_prefetch = 0 : i64, scratch_operands = 1 : i64, tpu.core_type = #tpu.core_type<tc>} {
    %c0 = arith.constant 0 : index
    %c0_0 = arith.constant 0 : index
    %0 = vector.load %arg0[%c0, %c0_0] : memref<8x3xf32, #tpu.memory_space<vmem>>, vector<8x3xf32>
    %c0_1 = arith.constant 0 : index
    %c0_2 = arith.constant 0 : index
    %1 = vector.load %arg1[%c0_1, %c0_2] : memref<3x512xf32, #tpu.memory_space<vmem>>, vector<3x512xf32>
    %cst = arith.constant dense<0.000000e+00> : vector<8x512xf32>
    %2 = tpu.matmul %0, %1, %cst {dimension_numbers = #tpu.dot_dimension_numbers<[1], [0], [0], [1], [0, 0, 1, 1], [], []>} : vector<8x3xf32>, vector<3x512xf32>, vector<8x512xf32> -> vector<8x512xf32>
    %c0_3 = arith.constant 0 : index
    %c0_4 = arith.constant 0 : index
    %3 = vector.load %arg3[%c0_3, %c0_4] : memref<1x512xf32, #tpu.memory_space<vmem>>, vector<1x512xf32>
    %4 = vector.broadcast %3 : vector<1x512xf32> to vector<8x512xf32>
    %5 = arith.addf %2, %4 : vector<8x512xf32>
    %c0_5 = arith.constant 0 : index
    %c0_6 = arith.constant 0 : index
    %6 = vector.load %arg7[%c0_5, %c0_6] : memref<8x512xf32, #tpu.memory_space<vmem>>, vector<8x512xf32>
    tpu.vector_store %arg7[%c0_5, %c0_6], %5 {strides = array<i32>} : memref<8x512xf32, #tpu.memory_space<vmem>>, vector<8x512xf32>,
    %c0_7 = arith.constant 0 : index
    %c0_8 = arith.constant 0 : index
    %7 = vector.load %arg2[%c0_7, %c0_8] : memref<32x512xf32, #tpu.memory_space<vmem>>, vector<32x512xf32>
    %cst_9 = arith.constant 0.000000e+00 : f32
    %8 = vector.broadcast %cst_9 : f32 to vector<1x128xf32>
    %cst_10 = arith.constant 0.000000e+00 : f32
    %9 = vector.broadcast %cst_10 : f32 to vector<1x128xf32>
    %c0_i32 = arith.constant 0 : i32
    %10 = arith.index_cast %c0_i32 : i32 to index
    %c0_11 = arith.constant 0 : index
    %11 = vector.load %arg7[%10, %c0_11] : memref<8x512xf32, #tpu.memory_space<vmem>>, vector<1x512xf32>
    %12 = vector.extract_strided_slice %8 {offsets = [0, 0], sizes = [1, 32], strides = [1, 1]} : vector<1x128xf32> to vector<1x32xf32>
    %cst_12 = arith.constant dense<0.000000e+00> : vector<1x512xf32>
    %13 = tpu.matmul %12, %7, %cst_12 {dimension_numbers = #tpu.dot_dimension_numbers<[1], [0], [0], [1], [0, 0, 1, 1], [], []>} : vector<1x32xf32>, vector<32x512xf32>, vector<1x512xf32> -> vector<1x512xf32>
    %14 = arith.addf %11, %13 : vector<1x512xf32>
    %15 = math.tanh %14 : vector<1x512xf32>
    %16 = vector.extract_strided_slice %15 {offsets = [0, 0], sizes = [1, 128], strides = [1, 1]} : vector<1x512xf32> to vector<1x128xf32>
    %cst_13 = arith.constant 5.000000e-01 : f32
    %17 = vector.broadcast %cst_13 : f32 to vector<1x128xf32>
    %18 = arith.mulf %17, %16 : vector<1x128xf32>
    %cst_14 = arith.constant 5.000000e-01 : f32
    %19 = vector.broadcast %cst_14 : f32 to vector<1x128xf32>
    %20 = arith.addf %18, %19 : vector<1x128xf32>
    %21 = vector.extract_strided_slice %15 {offsets = [0, 128], sizes = [1, 128], strides = [1, 1]} : vector<1x512xf32> to vector<1x128xf32>
    %cst_15 = arith.constant 5.000000e-01 : f32
    %22 = vector.broadcast %cst_15 : f32 to vector<1x128xf32>
    %23 = arith.mulf %22, %21 : vector<1x128xf32>
    %cst_16 = arith.constant 5.000000e-01 : f32
    %24 = vector.broadcast %cst_16 : f32 to vector<1x128xf32>
    %25 = arith.addf %23, %24 : vector<1x128xf32>
    %26 = vector.extract_strided_slice %15 {offsets = [0, 256], sizes = [1, 128], strides = [1, 1]} : vector<1x512xf32> to vector<1x128xf32>
    %27 = vector.extract_strided_slice %15 {offsets = [0, 384], sizes = [1, 128], strides = [1, 1]} : vector<1x512xf32> to vector<1x128xf32>
    %cst_17 = arith.constant 5.000000e-01 : f32
    %28 = vector.broadcast %cst_17 : f32 to vector<1x128xf32>
    %29 = arith.mulf %28, %27 : vector<1x128xf32>
    %cst_18 = arith.constant 5.000000e-01 : f32
    %30 = vector.broadcast %cst_18 : f32 to vector<1x128xf32>
    %31 = arith.addf %29, %30 : vector<1x128xf32>
    %32 = arith.mulf %25, %9 : vector<1x128xf32>
    %33 = arith.mulf %20, %26 : vector<1x128xf32>
    %34 = arith.addf %32, %33 : vector<1x128xf32>
    %35 = math.tanh %34 : vector<1x128xf32>
    %36 = arith.mulf %31, %35 : vector<1x128xf32>
    %c1_i32 = arith.constant 1 : i32
    %37 = arith.index_cast %c1_i32 : i32 to index
    %c0_19 = arith.constant 0 : index
    %38 = vector.load %arg7[%37, %c0_19] : memref<8x512xf32, #tpu.memory_space<vmem>>, vector<1x512xf32>
    %39 = vector.extract_strided_slice %36 {offsets = [0, 0], sizes = [1, 32], strides = [1, 1]} : vector<1x128xf32> to vector<1x32xf32>
    %cst_20 = arith.constant dense<0.000000e+00> : vector<1x512xf32>
    %40 = tpu.matmul %39, %7, %cst_20 {dimension_numbers = #tpu.dot_dimension_numbers<[1], [0], [0], [1], [0, 0, 1, 1], [], []>} : vector<1x32xf32>, vector<32x512xf32>, vector<1x512xf32> -> vector<1x512xf32>
    %41 = arith.addf %38, %40 : vector<1x512xf32>
    %42 = math.tanh %41 : vector<1x512xf32>
    %43 = vector.extract_strided_slice %42 {offsets = [0, 0], sizes = [1, 128], strides = [1, 1]} : vector<1x512xf32> to vector<1x128xf32>
    %cst_21 = arith.constant 5.000000e-01 : f32
    %44 = vector.broadcast %cst_21 : f32 to vector<1x128xf32>
    %45 = arith.mulf %44, %43 : vector<1x128xf32>
    %cst_22 = arith.constant 5.000000e-01 : f32
    %46 = vector.broadcast %cst_22 : f32 to vector<1x128xf32>
    %47 = arith.addf %45, %46 : vector<1x128xf32>
    %48 = vector.extract_strided_slice %42 {offsets = [0, 128], sizes = [1, 128], strides = [1, 1]} : vector<1x512xf32> to vector<1x128xf32>
    %cst_23 = arith.constant 5.000000e-01 : f32
    %49 = vector.broadcast %cst_23 : f32 to vector<1x128xf32>
    %50 = arith.mulf %49, %48 : vector<1x128xf32>
    %cst_24 = arith.constant 5.000000e-01 : f32
    %51 = vector.broadcast %cst_24 : f32 to vector<1x128xf32>
    %52 = arith.addf %50, %51 : vector<1x128xf32>
    %53 = vector.extract_strided_slice %42 {offsets = [0, 256], sizes = [1, 128], strides = [1, 1]} : vector<1x512xf32> to vector<1x128xf32>
    %54 = vector.extract_strided_slice %42 {offsets = [0, 384], sizes = [1, 128], strides = [1, 1]} : vector<1x512xf32> to vector<1x128xf32>
    %cst_25 = arith.constant 5.000000e-01 : f32
    %55 = vector.broadcast %cst_25 : f32 to vector<1x128xf32>
    %56 = arith.mulf %55, %54 : vector<1x128xf32>
    %cst_26 = arith.constant 5.000000e-01 : f32
    %57 = vector.broadcast %cst_26 : f32 to vector<1x128xf32>
    %58 = arith.addf %56, %57 : vector<1x128xf32>
    %59 = arith.mulf %52, %34 : vector<1x128xf32>
    %60 = arith.mulf %47, %53 : vector<1x128xf32>
    %61 = arith.addf %59, %60 : vector<1x128xf32>
    %62 = math.tanh %61 : vector<1x128xf32>
    %63 = arith.mulf %58, %62 : vector<1x128xf32>
    %c2_i32 = arith.constant 2 : i32
    %64 = arith.index_cast %c2_i32 : i32 to index
    %c0_27 = arith.constant 0 : index
    %65 = vector.load %arg7[%64, %c0_27] : memref<8x512xf32, #tpu.memory_space<vmem>>, vector<1x512xf32>
    %66 = vector.extract_strided_slice %63 {offsets = [0, 0], sizes = [1, 32], strides = [1, 1]} : vector<1x128xf32> to vector<1x32xf32>
    %cst_28 = arith.constant dense<0.000000e+00> : vector<1x512xf32>
    %67 = tpu.matmul %66, %7, %cst_28 {dimension_numbers = #tpu.dot_dimension_numbers<[1], [0], [0], [1], [0, 0, 1, 1], [], []>} : vector<1x32xf32>, vector<32x512xf32>, vector<1x512xf32> -> vector<1x512xf32>
    %68 = arith.addf %65, %67 : vector<1x512xf32>
    %69 = math.tanh %68 : vector<1x512xf32>
    %70 = vector.extract_strided_slice %69 {offsets = [0, 0], sizes = [1, 128], strides = [1, 1]} : vector<1x512xf32> to vector<1x128xf32>
    %cst_29 = arith.constant 5.000000e-01 : f32
    %71 = vector.broadcast %cst_29 : f32 to vector<1x128xf32>
    %72 = arith.mulf %71, %70 : vector<1x128xf32>
    %cst_30 = arith.constant 5.000000e-01 : f32
    %73 = vector.broadcast %cst_30 : f32 to vector<1x128xf32>
    %74 = arith.addf %72, %73 : vector<1x128xf32>
    %75 = vector.extract_strided_slice %69 {offsets = [0, 128], sizes = [1, 128], strides = [1, 1]} : vector<1x512xf32> to vector<1x128xf32>
    %cst_31 = arith.constant 5.000000e-01 : f32
    %76 = vector.broadcast %cst_31 : f32 to vector<1x128xf32>
    %77 = arith.mulf %76, %75 : vector<1x128xf32>
    %cst_32 = arith.constant 5.000000e-01 : f32
    %78 = vector.broadcast %cst_32 : f32 to vector<1x128xf32>
    %79 = arith.addf %77, %78 : vector<1x128xf32>
    %80 = vector.extract_strided_slice %69 {offsets = [0, 256], sizes = [1, 128], strides = [1, 1]} : vector<1x512xf32> to vector<1x128xf32>
    %81 = vector.extract_strided_slice %69 {offsets = [0, 384], sizes = [1, 128], strides = [1, 1]} : vector<1x512xf32> to vector<1x128xf32>
    %cst_33 = arith.constant 5.000000e-01 : f32
    %82 = vector.broadcast %cst_33 : f32 to vector<1x128xf32>
    %83 = arith.mulf %82, %81 : vector<1x128xf32>
    %cst_34 = arith.constant 5.000000e-01 : f32
    %84 = vector.broadcast %cst_34 : f32 to vector<1x128xf32>
    %85 = arith.addf %83, %84 : vector<1x128xf32>
    %86 = arith.mulf %79, %61 : vector<1x128xf32>
    %87 = arith.mulf %74, %80 : vector<1x128xf32>
    %88 = arith.addf %86, %87 : vector<1x128xf32>
    %89 = math.tanh %88 : vector<1x128xf32>
    %90 = arith.mulf %85, %89 : vector<1x128xf32>
    %c3_i32 = arith.constant 3 : i32
    %91 = arith.index_cast %c3_i32 : i32 to index
    %c0_35 = arith.constant 0 : index
    %92 = vector.load %arg7[%91, %c0_35] : memref<8x512xf32, #tpu.memory_space<vmem>>, vector<1x512xf32>
    %93 = vector.extract_strided_slice %90 {offsets = [0, 0], sizes = [1, 32], strides = [1, 1]} : vector<1x128xf32> to vector<1x32xf32>
    %cst_36 = arith.constant dense<0.000000e+00> : vector<1x512xf32>
    %94 = tpu.matmul %93, %7, %cst_36 {dimension_numbers = #tpu.dot_dimension_numbers<[1], [0], [0], [1], [0, 0, 1, 1], [], []>} : vector<1x32xf32>, vector<32x512xf32>, vector<1x512xf32> -> vector<1x512xf32>
    %95 = arith.addf %92, %94 : vector<1x512xf32>
    %96 = math.tanh %95 : vector<1x512xf32>
    %97 = vector.extract_strided_slice %96 {offsets = [0, 0], sizes = [1, 128], strides = [1, 1]} : vector<1x512xf32> to vector<1x128xf32>
    %cst_37 = arith.constant 5.000000e-01 : f32
    %98 = vector.broadcast %cst_37 : f32 to vector<1x128xf32>
    %99 = arith.mulf %98, %97 : vector<1x128xf32>
    %cst_38 = arith.constant 5.000000e-01 : f32
    %100 = vector.broadcast %cst_38 : f32 to vector<1x128xf32>
    %101 = arith.addf %99, %100 : vector<1x128xf32>
    %102 = vector.extract_strided_slice %96 {offsets = [0, 128], sizes = [1, 128], strides = [1, 1]} : vector<1x512xf32> to vector<1x128xf32>
    %cst_39 = arith.constant 5.000000e-01 : f32
    %103 = vector.broadcast %cst_39 : f32 to vector<1x128xf32>
    %104 = arith.mulf %103, %102 : vector<1x128xf32>
    %cst_40 = arith.constant 5.000000e-01 : f32
    %105 = vector.broadcast %cst_40 : f32 to vector<1x128xf32>
    %106 = arith.addf %104, %105 : vector<1x128xf32>
    %107 = vector.extract_strided_slice %96 {offsets = [0, 256], sizes = [1, 128], strides = [1, 1]} : vector<1x512xf32> to vector<1x128xf32>
    %108 = vector.extract_strided_slice %96 {offsets = [0, 384], sizes = [1, 128], strides = [1, 1]} : vector<1x512xf32> to vector<1x128xf32>
    %cst_41 = arith.constant 5.000000e-01 : f32
    %109 = vector.broadcast %cst_41 : f32 to vector<1x128xf32>
    %110 = arith.mulf %109, %108 : vector<1x128xf32>
    %cst_42 = arith.constant 5.000000e-01 : f32
    %111 = vector.broadcast %cst_42 : f32 to vector<1x128xf32>
    %112 = arith.addf %110, %111 : vector<1x128xf32>
    %113 = arith.mulf %106, %88 : vector<1x128xf32>
    %114 = arith.mulf %101, %107 : vector<1x128xf32>
    %115 = arith.addf %113, %114 : vector<1x128xf32>
    %116 = math.tanh %115 : vector<1x128xf32>
    %117 = arith.mulf %112, %116 : vector<1x128xf32>
    %c4_i32 = arith.constant 4 : i32
    %118 = arith.index_cast %c4_i32 : i32 to index
    %c0_43 = arith.constant 0 : index
    %119 = vector.load %arg7[%118, %c0_43] : memref<8x512xf32, #tpu.memory_space<vmem>>, vector<1x512xf32>
    %120 = vector.extract_strided_slice %117 {offsets = [0, 0], sizes = [1, 32], strides = [1, 1]} : vector<1x128xf32> to vector<1x32xf32>
    %cst_44 = arith.constant dense<0.000000e+00> : vector<1x512xf32>
    %121 = tpu.matmul %120, %7, %cst_44 {dimension_numbers = #tpu.dot_dimension_numbers<[1], [0], [0], [1], [0, 0, 1, 1], [], []>} : vector<1x32xf32>, vector<32x512xf32>, vector<1x512xf32> -> vector<1x512xf32>
    %122 = arith.addf %119, %121 : vector<1x512xf32>
    %123 = math.tanh %122 : vector<1x512xf32>
    %124 = vector.extract_strided_slice %123 {offsets = [0, 0], sizes = [1, 128], strides = [1, 1]} : vector<1x512xf32> to vector<1x128xf32>
    %cst_45 = arith.constant 5.000000e-01 : f32
    %125 = vector.broadcast %cst_45 : f32 to vector<1x128xf32>
    %126 = arith.mulf %125, %124 : vector<1x128xf32>
    %cst_46 = arith.constant 5.000000e-01 : f32
    %127 = vector.broadcast %cst_46 : f32 to vector<1x128xf32>
    %128 = arith.addf %126, %127 : vector<1x128xf32>
    %129 = vector.extract_strided_slice %123 {offsets = [0, 128], sizes = [1, 128], strides = [1, 1]} : vector<1x512xf32> to vector<1x128xf32>
    %cst_47 = arith.constant 5.000000e-01 : f32
    %130 = vector.broadcast %cst_47 : f32 to vector<1x128xf32>
    %131 = arith.mulf %130, %129 : vector<1x128xf32>
    %cst_48 = arith.constant 5.000000e-01 : f32
    %132 = vector.broadcast %cst_48 : f32 to vector<1x128xf32>
    %133 = arith.addf %131, %132 : vector<1x128xf32>
    %134 = vector.extract_strided_slice %123 {offsets = [0, 256], sizes = [1, 128], strides = [1, 1]} : vector<1x512xf32> to vector<1x128xf32>
    %135 = vector.extract_strided_slice %123 {offsets = [0, 384], sizes = [1, 128], strides = [1, 1]} : vector<1x512xf32> to vector<1x128xf32>
    %cst_49 = arith.constant 5.000000e-01 : f32
    %136 = vector.broadcast %cst_49 : f32 to vector<1x128xf32>
    %137 = arith.mulf %136, %135 : vector<1x128xf32>
    %cst_50 = arith.constant 5.000000e-01 : f32
    %138 = vector.broadcast %cst_50 : f32 to vector<1x128xf32>
    %139 = arith.addf %137, %138 : vector<1x128xf32>
    %140 = arith.mulf %133, %115 : vector<1x128xf32>
    %141 = arith.mulf %128, %134 : vector<1x128xf32>
    %142 = arith.addf %140, %141 : vector<1x128xf32>
    %143 = math.tanh %142 : vector<1x128xf32>
    %144 = arith.mulf %139, %143 : vector<1x128xf32>
    %c5_i32 = arith.constant 5 : i32
    %145 = arith.index_cast %c5_i32 : i32 to index
    %c0_51 = arith.constant 0 : index
    %146 = vector.load %arg7[%145, %c0_51] : memref<8x512xf32, #tpu.memory_space<vmem>>, vector<1x512xf32>
    %147 = vector.extract_strided_slice %144 {offsets = [0, 0], sizes = [1, 32], strides = [1, 1]} : vector<1x128xf32> to vector<1x32xf32>
    %cst_52 = arith.constant dense<0.000000e+00> : vector<1x512xf32>
    %148 = tpu.matmul %147, %7, %cst_52 {dimension_numbers = #tpu.dot_dimension_numbers<[1], [0], [0], [1], [0, 0, 1, 1], [], []>} : vector<1x32xf32>, vector<32x512xf32>, vector<1x512xf32> -> vector<1x512xf32>
    %149 = arith.addf %146, %148 : vector<1x512xf32>
    %150 = math.tanh %149 : vector<1x512xf32>
    %151 = vector.extract_strided_slice %150 {offsets = [0, 0], sizes = [1, 128], strides = [1, 1]} : vector<1x512xf32> to vector<1x128xf32>
    %cst_53 = arith.constant 5.000000e-01 : f32
    %152 = vector.broadcast %cst_53 : f32 to vector<1x128xf32>
    %153 = arith.mulf %152, %151 : vector<1x128xf32>
    %cst_54 = arith.constant 5.000000e-01 : f32
    %154 = vector.broadcast %cst_54 : f32 to vector<1x128xf32>
    %155 = arith.addf %153, %154 : vector<1x128xf32>
    %156 = vector.extract_strided_slice %150 {offsets = [0, 128], sizes = [1, 128], strides = [1, 1]} : vector<1x512xf32> to vector<1x128xf32>
    %cst_55 = arith.constant 5.000000e-01 : f32
    %157 = vector.broadcast %cst_55 : f32 to vector<1x128xf32>
    %158 = arith.mulf %157, %156 : vector<1x128xf32>
    %cst_56 = arith.constant 5.000000e-01 : f32
    %159 = vector.broadcast %cst_56 : f32 to vector<1x128xf32>
    %160 = arith.addf %158, %159 : vector<1x128xf32>
    %161 = vector.extract_strided_slice %150 {offsets = [0, 256], sizes = [1, 128], strides = [1, 1]} : vector<1x512xf32> to vector<1x128xf32>
    %162 = vector.extract_strided_slice %150 {offsets = [0, 384], sizes = [1, 128], strides = [1, 1]} : vector<1x512xf32> to vector<1x128xf32>
    %cst_57 = arith.constant 5.000000e-01 : f32
    %163 = vector.broadcast %cst_57 : f32 to vector<1x128xf32>
    %164 = arith.mulf %163, %162 : vector<1x128xf32>
    %cst_58 = arith.constant 5.000000e-01 : f32
    %165 = vector.broadcast %cst_58 : f32 to vector<1x128xf32>
    %166 = arith.addf %164, %165 : vector<1x128xf32>
    %167 = arith.mulf %160, %142 : vector<1x128xf32>
    %168 = arith.mulf %155, %161 : vector<1x128xf32>
    %169 = arith.addf %167, %168 : vector<1x128xf32>
    %170 = math.tanh %169 : vector<1x128xf32>
    %171 = arith.mulf %166, %170 : vector<1x128xf32>
    %c6_i32 = arith.constant 6 : i32
    %172 = arith.index_cast %c6_i32 : i32 to index
    %c0_59 = arith.constant 0 : index
    %173 = vector.load %arg7[%172, %c0_59] : memref<8x512xf32, #tpu.memory_space<vmem>>, vector<1x512xf32>
    %174 = vector.extract_strided_slice %171 {offsets = [0, 0], sizes = [1, 32], strides = [1, 1]} : vector<1x128xf32> to vector<1x32xf32>
    %cst_60 = arith.constant dense<0.000000e+00> : vector<1x512xf32>
    %175 = tpu.matmul %174, %7, %cst_60 {dimension_numbers = #tpu.dot_dimension_numbers<[1], [0], [0], [1], [0, 0, 1, 1], [], []>} : vector<1x32xf32>, vector<32x512xf32>, vector<1x512xf32> -> vector<1x512xf32>
    %176 = arith.addf %173, %175 : vector<1x512xf32>
    %177 = math.tanh %176 : vector<1x512xf32>
    %178 = vector.extract_strided_slice %177 {offsets = [0, 0], sizes = [1, 128], strides = [1, 1]} : vector<1x512xf32> to vector<1x128xf32>
    %cst_61 = arith.constant 5.000000e-01 : f32
    %179 = vector.broadcast %cst_61 : f32 to vector<1x128xf32>
    %180 = arith.mulf %179, %178 : vector<1x128xf32>
    %cst_62 = arith.constant 5.000000e-01 : f32
    %181 = vector.broadcast %cst_62 : f32 to vector<1x128xf32>
    %182 = arith.addf %180, %181 : vector<1x128xf32>
    %183 = vector.extract_strided_slice %177 {offsets = [0, 128], sizes = [1, 128], strides = [1, 1]} : vector<1x512xf32> to vector<1x128xf32>
    %cst_63 = arith.constant 5.000000e-01 : f32
    %184 = vector.broadcast %cst_63 : f32 to vector<1x128xf32>
    %185 = arith.mulf %184, %183 : vector<1x128xf32>
    %cst_64 = arith.constant 5.000000e-01 : f32
    %186 = vector.broadcast %cst_64 : f32 to vector<1x128xf32>
    %187 = arith.addf %185, %186 : vector<1x128xf32>
    %188 = vector.extract_strided_slice %177 {offsets = [0, 256], sizes = [1, 128], strides = [1, 1]} : vector<1x512xf32> to vector<1x128xf32>
    %189 = vector.extract_strided_slice %177 {offsets = [0, 384], sizes = [1, 128], strides = [1, 1]} : vector<1x512xf32> to vector<1x128xf32>
    %cst_65 = arith.constant 5.000000e-01 : f32
    %190 = vector.broadcast %cst_65 : f32 to vector<1x128xf32>
    %191 = arith.mulf %190, %189 : vector<1x128xf32>
    %cst_66 = arith.constant 5.000000e-01 : f32
    %192 = vector.broadcast %cst_66 : f32 to vector<1x128xf32>
    %193 = arith.addf %191, %192 : vector<1x128xf32>
    %194 = arith.mulf %187, %169 : vector<1x128xf32>
    %195 = arith.mulf %182, %188 : vector<1x128xf32>
    %196 = arith.addf %194, %195 : vector<1x128xf32>
    %197 = math.tanh %196 : vector<1x128xf32>
    %198 = arith.mulf %193, %197 : vector<1x128xf32>
    %c7_i32 = arith.constant 7 : i32
    %199 = arith.index_cast %c7_i32 : i32 to index
    %c0_67 = arith.constant 0 : index
    %200 = vector.load %arg7[%199, %c0_67] : memref<8x512xf32, #tpu.memory_space<vmem>>, vector<1x512xf32>
    %201 = vector.extract_strided_slice %198 {offsets = [0, 0], sizes = [1, 32], strides = [1, 1]} : vector<1x128xf32> to vector<1x32xf32>
    %cst_68 = arith.constant dense<0.000000e+00> : vector<1x512xf32>
    %202 = tpu.matmul %201, %7, %cst_68 {dimension_numbers = #tpu.dot_dimension_numbers<[1], [0], [0], [1], [0, 0, 1, 1], [], []>} : vector<1x32xf32>, vector<32x512xf32>, vector<1x512xf32> -> vector<1x512xf32>
    %203 = arith.addf %200, %202 : vector<1x512xf32>
    %204 = math.tanh %203 : vector<1x512xf32>
    %205 = vector.extract_strided_slice %204 {offsets = [0, 0], sizes = [1, 128], strides = [1, 1]} : vector<1x512xf32> to vector<1x128xf32>
    %cst_69 = arith.constant 5.000000e-01 : f32
    %206 = vector.broadcast %cst_69 : f32 to vector<1x128xf32>
    %207 = arith.mulf %206, %205 : vector<1x128xf32>
    %cst_70 = arith.constant 5.000000e-01 : f32
    %208 = vector.broadcast %cst_70 : f32 to vector<1x128xf32>
    %209 = arith.addf %207, %208 : vector<1x128xf32>
    %210 = vector.extract_strided_slice %204 {offsets = [0, 128], sizes = [1, 128], strides = [1, 1]} : vector<1x512xf32> to vector<1x128xf32>
    %cst_71 = arith.constant 5.000000e-01 : f32
    %211 = vector.broadcast %cst_71 : f32 to vector<1x128xf32>
    %212 = arith.mulf %211, %210 : vector<1x128xf32>
    %cst_72 = arith.constant 5.000000e-01 : f32
    %213 = vector.broadcast %cst_72 : f32 to vector<1x128xf32>
    %214 = arith.addf %212, %213 : vector<1x128xf32>
    %215 = vector.extract_strided_slice %204 {offsets = [0, 256], sizes = [1, 128], strides = [1, 1]} : vector<1x512xf32> to vector<1x128xf32>
    %216 = vector.extract_strided_slice %204 {offsets = [0, 384], sizes = [1, 128], strides = [1, 1]} : vector<1x512xf32> to vector<1x128xf32>
    %cst_73 = arith.constant 5.000000e-01 : f32
    %217 = vector.broadcast %cst_73 : f32 to vector<1x128xf32>
    %218 = arith.mulf %217, %216 : vector<1x128xf32>
    %cst_74 = arith.constant 5.000000e-01 : f32
    %219 = vector.broadcast %cst_74 : f32 to vector<1x128xf32>
    %220 = arith.addf %218, %219 : vector<1x128xf32>
    %221 = arith.mulf %214, %196 : vector<1x128xf32>
    %222 = arith.mulf %209, %215 : vector<1x128xf32>
    %223 = arith.addf %221, %222 : vector<1x128xf32>
    %224 = math.tanh %223 : vector<1x128xf32>
    %225 = arith.mulf %220, %224 : vector<1x128xf32>
    %c8_i32 = arith.constant 8 : i32
    %226 = vector.extract_strided_slice %225 {offsets = [0, 0], sizes = [1, 32], strides = [1, 1]} : vector<1x128xf32> to vector<1x32xf32>
    %c0_75 = arith.constant 0 : index
    %c0_76 = arith.constant 0 : index
    %227 = vector.load %arg4[%c0_75, %c0_76] : memref<32x16xf32, #tpu.memory_space<vmem>>, vector<32x16xf32>
    %cst_77 = arith.constant dense<0.000000e+00> : vector<1x16xf32>
    %228 = tpu.matmul %226, %227, %cst_77 {dimension_numbers = #tpu.dot_dimension_numbers<[1], [0], [0], [1], [0, 0, 1, 1], [], []>} : vector<1x32xf32>, vector<32x16xf32>, vector<1x16xf32> -> vector<1x16xf32>
    %c0_78 = arith.constant 0 : index
    %c0_79 = arith.constant 0 : index
    %229 = vector.load %arg5[%c0_78, %c0_79] : memref<1x16xf32, #tpu.memory_space<vmem>>, vector<1x16xf32>
    %230 = arith.addf %228, %229 : vector<1x16xf32>
    %231 = arith.negf %230 : vector<1x16xf32>
    %232 = math.exp %231 : vector<1x16xf32>
    %cst_80 = arith.constant 1.000000e+00 : f32
    %233 = vector.broadcast %cst_80 : f32 to vector<1x16xf32>
    %234 = arith.addf %233, %232 : vector<1x16xf32>
    %235 = arith.divf %233, %234 : vector<1x16xf32>
    %c0_81 = arith.constant 0 : index
    %c0_82 = arith.constant 0 : index
    %236 = vector.load %arg6[%c0_81, %c0_82] : memref<1x16xf32, #tpu.memory_space<vmem>>, vector<1x16xf32>
    tpu.vector_store %arg6[%c0_81, %c0_82], %235 {strides = array<i32>} : memref<1x16xf32, #tpu.memory_space<vmem>>, vector<1x16xf32>,
    return
  }
}

</mosaic_0001>

<llo_original>
// kernel: tpu_custom_call.1
$region0: #{tpu_custom_call.1}
  #allocation0 [shape = 'u32[]', space=smem, size = 0x4, offset = 0x4, fixed_abs, tag = 'smem constant byte address 0x4 - core index']
  #allocation1 [shape = 'u32[144,128]{1,0:T(1,128)}', space=vmem, size = 0x12000, scoped, tag = 'internal scratch']
  #allocation2 [shape = 'f32[8,512]{1,0:T(8,128)}', space=vmem, size = 0x4000, scoped, tag = 'scratch operand']
  %s0 = inlined_call_operand.vmem [shape: f32[8,3], index: 0, kind: input, shape index: {}]
  %s1 = inlined_call_operand.vmem [shape: f32[3,512], index: 1, kind: input, shape index: {}]
  %s2 = inlined_call_operand.hbm [shape: f32[32,512], index: 2, kind: input, shape index: {}]
  %s3 = inlined_call_operand.vmem [shape: f32[1,512], index: 3, kind: input, shape index: {}]
  %s4 = inlined_call_operand.vmem [shape: f32[32,16], index: 4, kind: input, shape index: {}]
  %s5 = inlined_call_operand.vmem [shape: f32[1,16], index: 5, kind: input, shape index: {}]
  %s6 = inlined_call_operand.hbm [shape: f32[1,16], index: 6, kind: output, shape index: {}]
  %s7 = sld [smem:[#allocation0]]
  $region38: #{tpu_custom_call.1} parent=0
    _
  %s9 = ssub.s32 1, %s7
  %s10 = scalar_select 0, %s9, %s7
  $region1: #{tpu_custom_call.1} parent=0
    #allocation3 [shape = 'u8[65536]{0}', space=vmem, size = 0x10000, scoped, tag = 'input window, operand 2, single buffered']
    #allocation4 [shape = 's32[1]{0}', space=sflag, size = 0x4, scoped, tag = 'scoped memory for tpu_custom_call.1']
    #allocation5 [shape = 's32[1]{0}', space=sflag, size = 0x4, scoped, tag = 'scoped memory for tpu_custom_call.1']
    #allocation6 [shape = 'u8[512]{0}', space=vmem, size = 0x400, scoped, tag = 'output window, operand 0, single buffered']
    %11 = vsyncpa [#allocation4], 0
    %12 = vsyncpa [#allocation5], 0
    // Predicated region
    $region2: #{tpu_custom_call.1} parent=1 // pred_check
      _
    $region3: #{tpu_custom_call.1} parent=1 // pred_check_branch
      %14 = sbr.rel (0) target = $region5
    $region4: #{tpu_custom_call.1} parent=1 // pred_region
      _
    $region5: #{tpu_custom_call.1} parent=1 // pred_fallthru
      _
    // Predicated region
    $region6: #{tpu_custom_call.1} parent=1 // pred_check
      _
    $region7: #{tpu_custom_call.1} parent=1 // pred_check_branch
      %16 = sbr.rel (0) target = $region9
    $region8: #{tpu_custom_call.1} parent=1 // pred_region
      _
    $region9: #{tpu_custom_call.1} parent=1 // pred_fallthru
      _
    // Predicated region
    $region10: #{tpu_custom_call.1} parent=1 // pred_check
      _
    $region11: #{tpu_custom_call.1} parent=1 // pred_check_branch
      %18 = sbr.rel (0) target = $region13
    $region12: #{tpu_custom_call.1} parent=1 // pred_region
      %s20 = ssub.s32 2048, 2048
      %21 = vsyncadd [#allocation4], %s20
      %s22 = sshll.u32 [#allocation3], 4
      %s23 = int_to_ptr.vmem [resolvable:$true] %s22
      %28 = dma.hbm_to_vmem [thread:$0]  %s2, 2048, %s23, [#allocation4], 512, 512, 32
    $region13: #{tpu_custom_call.1} parent=1 // pred_fallthru
      _
    // Predicated region
    $region14: #{tpu_custom_call.1} parent=1 // pred_check
      _
    $region15: #{tpu_custom_call.1} parent=1 // pred_check_branch
      %30 = sbr.rel (0) target = $region17
    $region16: #{tpu_custom_call.1} parent=1 // pred_region
      _
    $region17: #{tpu_custom_call.1} parent=1 // pred_fallthru
      _
    // Predicated region
    $region18: #{tpu_custom_call.1} parent=1 // pred_check
      _
    $region19: #{tpu_custom_call.1} parent=1 // pred_check_branch
      %32 = sbr.rel (0) target = $region21
    $region20: #{tpu_custom_call.1} parent=1 // pred_region
      _
    $region21: #{tpu_custom_call.1} parent=1 // pred_fallthru
      _
    // Predicated region
    $region22: #{tpu_custom_call.1} parent=1 // pred_check
      _
    $region23: #{tpu_custom_call.1} parent=1 // pred_check_branch
      %34 = sbr.rel (0) target = $region25
    $region24: #{tpu_custom_call.1} parent=1 // pred_region
      _
    $region25: #{tpu_custom_call.1} parent=1 // pred_fallthru
      _
    // Predicated region
    $region26: #{tpu_custom_call.1} parent=1 // pred_check
      _
    $region27: #{tpu_custom_call.1} parent=1 // pred_check_branch
      %36 = sbr.rel (0) target = $region29
    $region28: #{tpu_custom_call.1} parent=1 // pred_region
      %37 = dma.done [#allocation4], 2048
    $region29: #{tpu_custom_call.1} parent=1 // pred_fallthru
      _
    %v38 = vld [vmem:[%s0] sm:$0xff]
    %v39 = vld [vmem:[%s1] sm:$0x77]
    %v40 = vld [vmem:[%s1 + $0x8] sm:$0x77]
    %v41 = vld [vmem:[%s3] sm:$0xf]
    %v43 = vlaneseq
    %v44 = vshrl.u32 %v43, 7
    %v45 = vsub.s32 0, %v44
    %v46 = vrot.slane %v41, %v45
    %v47 = vlaneseq
    %v48 = vshrl.u32 %v47, 7
    %v49 = vsub.s32 1, %v48
    %v50 = vrot.slane %v41, %v49
    %v51 = vlaneseq
    %v52 = vshrl.u32 %v51, 7
    %v53 = vsub.s32 2, %v52
    %v54 = vrot.slane %v41, %v53
    %v55 = vlaneseq
    %v56 = vshrl.u32 %v55, 7
    %v57 = vsub.s32 3, %v56
    %v58 = vrot.slane %v41, %v57
    %v65 = vcombine.high %v39, %v39
    %v66 = vcombine.high %v40, %v40
    %vm67 = vcmask 23552
    %v69 = vsel %vm67, %v38, 0
    %vm71 = vcmask 1042432
    %v72 = vsel %vm71, %v39, 0
    %v74 = vsel %vm71, %v65, 0
    %v76 = vsel %vm71, %v40, 0
    %v78 = vsel %vm71, %v66, 0
    %80 = vmatprep.subr.mxu0 %v74
    %81 = vmatpush1.msra.mxu0 %v72
    %82 = vmatprep.subr.mxu0 0.0
    %83 = vmatpush1.msra.mxu0 0.0
    %84 = vmatprep.subr.mxu0 0.0
    %85 = vmatpush1.msra.mxu0 0.0
    %86 = vmatprep.subr.mxu0 0.0
    %87 = vmatpush1.msra.mxu0 0.0
    %88 = vmatprep.subr.mxu0 0.0
    %89 = vmatpush1.msra.mxu0 0.0
    %90 = vmatprep.subr.mxu0 0.0
    %91 = vmatpush1.msra.mxu0 0.0
    %92 = vmatprep.subr.mxu0 0.0
    %93 = vmatpush1.msra.mxu0 0.0
    %94 = vmatprep.subr.mxu0 0.0
    %95 = vmatpush1.msra.mxu0 0.0
    %96 = vmatprep.subr.mxu0 0.0
    %97 = vmatpush1.msra.mxu0 0.0
    %98 = vmatprep.subr.mxu0 0.0
    %99 = vmatpush1.msra.mxu0 0.0
    %100 = vmatprep.subr.mxu0 0.0
    %101 = vmatpush1.msra.mxu0 0.0
    %102 = vmatprep.subr.mxu0 0.0
    %103 = vmatpush1.msra.mxu0 0.0
    %104 = vmatprep.subr.mxu0 0.0
    %105 = vmatpush1.msra.mxu0 0.0
    %106 = vmatprep.subr.mxu0 0.0
    %107 = vmatpush1.msra.mxu0 0.0
    %108 = vmatprep.subr.mxu0 0.0
    %109 = vmatpush1.msra.mxu0 0.0
    %110 = vmatprep.subr.mxu0 0.0
    %111 = vmatpush1.msra.mxu0 0.0
    %112 = vmatprep.subr.mxu0 0.0
    %113 = vmatpush1.msra.mxu0 0.0
    %114 = vmatprep.subr.mxu0 0.0
    %115 = vmatpush1.msra.mxu0 0.0
    %116 = vmatprep.subr.mxu0 0.0
    %117 = vmatpush1.msra.mxu0 0.0
    %118 = vmatprep.subr.mxu0 0.0
    %119 = vmatpush1.msra.mxu0 0.0
    %120 = vmatprep.subr.mxu0 0.0
    %121 = vmatpush1.msra.mxu0 0.0
    %122 = vmatprep.subr.mxu0 0.0
    %123 = vmatpush1.msra.mxu0 0.0
    %124 = vmatprep.subr.mxu0 0.0
    %125 = vmatpush1.msra.mxu0 0.0
    %126 = vmatprep.subr.mxu0 0.0
    %127 = vmatpush1.msra.mxu0 0.0
    %128 = vmatprep.subr.mxu0 0.0
    %129 = vmatpush1.msra.mxu0 0.0
    %130 = vmatprep.subr.mxu0 0.0
    %131 = vmatpush1.msra.mxu0 0.0
    %132 = vmatprep.subr.mxu0 0.0
    %133 = vmatpush1.msra.mxu0 0.0
    %134 = vmatprep.subr.mxu0 0.0
    %135 = vmatpush1.msra.mxu0 0.0
    %136 = vmatprep.subr.mxu0 0.0
    %137 = vmatpush1.msra.mxu0 0.0
    %138 = vmatprep.subr.mxu0 0.0
    %139 = vmatpush1.msra.mxu0 0.0
    %140 = vmatprep.subr.mxu0 0.0
    %141 = vmatpush1.msra.mxu0 0.0
    %142 = vmatprep.subr.mxu0 0.0
    %143 = vmatpush1.msra.mxu0 0.0
    %144 = vmatprep.mubr.f32.mxu0 0.0
    %145 = vmatmul.mubr.f32.gmra.mrb[0].mxu0 %v69
    %v146 = vpop.f32.mrb[0].mxu0
    %v147 = vadd.f32 %v46, %v146
    %v148 = vpop.f32.mrb[0].mxu0
    %v149 = vadd.f32 %v50, %v148
    %150 = vdwg.mxu0
    %151 = vmatprep.subr.mxu0 %v78
    %152 = vmatpush1.msra.mxu0 %v76
    %153 = vmatprep.subr.mxu0 0.0
    %154 = vmatpush1.msra.mxu0 0.0
    %155 = vmatprep.subr.mxu0 0.0
    %156 = vmatpush1.msra.mxu0 0.0
    %157 = vmatprep.subr.mxu0 0.0
    %158 = vmatpush1.msra.mxu0 0.0
    %159 = vmatprep.subr.mxu0 0.0
    %160 = vmatpush1.msra.mxu0 0.0
    %161 = vmatprep.subr.mxu0 0.0
    %162 = vmatpush1.msra.mxu0 0.0
    %163 = vmatprep.subr.mxu0 0.0
    %164 = vmatpush1.msra.mxu0 0.0
    %165 = vmatprep.subr.mxu0 0.0
    %166 = vmatpush1.msra.mxu0 0.0
    %167 = vmatprep.subr.mxu0 0.0
    %168 = vmatpush1.msra.mxu0 0.0
    %169 = vmatprep.subr.mxu0 0.0
    %170 = vmatpush1.msra.mxu0 0.0
    %171 = vmatprep.subr.mxu0 0.0
    %172 = vmatpush1.msra.mxu0 0.0
    %173 = vmatprep.subr.mxu0 0.0
    %174 = vmatpush1.msra.mxu0 0.0
    %175 = vmatprep.subr.mxu0 0.0
    %176 = vmatpush1.msra.mxu0 0.0
    %177 = vmatprep.subr.mxu0 0.0
    %178 = vmatpush1.msra.mxu0 0.0
    %179 = vmatprep.subr.mxu0 0.0
    %180 = vmatpush1.msra.mxu0 0.0
    %181 = vmatprep.subr.mxu0 0.0
    %182 = vmatpush1.msra.mxu0 0.0
    %183 = vmatprep.subr.mxu0 0.0
    %184 = vmatpush1.msra.mxu0 0.0
    %185 = vmatprep.subr.mxu0 0.0
    %186 = vmatpush1.msra.mxu0 0.0
    %187 = vmatprep.subr.mxu0 0.0
    %188 = vmatpush1.msra.mxu0 0.0
    %189 = vmatprep.subr.mxu0 0.0
    %190 = vmatpush1.msra.mxu0 0.0
    %191 = vmatprep.subr.mxu0 0.0
    %192 = vmatpush1.msra.mxu0 0.0
    %193 = vmatprep.subr.mxu0 0.0
    %194 = vmatpush1.msra.mxu0 0.0
    %195 = vmatprep.subr.mxu0 0.0
    %196 = vmatpush1.msra.mxu0 0.0
    %197 = vmatprep.subr.mxu0 0.0
    %198 = vmatpush1.msra.mxu0 0.0
    %199 = vmatprep.subr.mxu0 0.0
    %200 = vmatpush1.msra.mxu0 0.0
    %201 = vmatprep.subr.mxu0 0.0
    %202 = vmatpush1.msra.mxu0 0.0
    %203 = vmatprep.subr.mxu0 0.0
    %204 = vmatpush1.msra.mxu0 0.0
    %205 = vmatprep.subr.mxu0 0.0
    %206 = vmatpush1.msra.mxu0 0.0
    %207 = vmatprep.subr.mxu0 0.0
    %208 = vmatpush1.msra.mxu0 0.0
    %209 = vmatprep.subr.mxu0 0.0
    %210 = vmatpush1.msra.mxu0 0.0
    %211 = vmatprep.subr.mxu0 0.0
    %212 = vmatpush1.msra.mxu0 0.0
    %213 = vmatprep.subr.mxu0 0.0
    %214 = vmatpush1.msra.mxu0 0.0
    %215 = vmatprep.mubr.f32.mxu0 0.0
    %216 = vmatmul.mubr.f32.gmra.mrb[0].mxu0 %v69
    %v217 = vpop.f32.mrb[0].mxu0
    %v218 = vadd.f32 %v54, %v217
    %v219 = vpop.f32.mrb[0].mxu0
    %v220 = vadd.f32 %v58, %v219
    %221 = vdwg.mxu0
    %222 = vst [vmem:[#allocation2] sm:$0xff] %v147
    %223 = vst [vmem:[#allocation2 + $0x8] sm:$0xff] %v149
    %224 = vst [vmem:[#allocation2 + $0x10] sm:$0xff] %v218
    %225 = vst [vmem:[#allocation2 + $0x18] sm:$0xff] %v220
    %v226 = vld [vmem:[#allocation3] sm:$0xff]
    %v227 = vld [vmem:[#allocation3 + $0x8] sm:$0xff]
    %v228 = vld [vmem:[#allocation3 + $0x10] sm:$0xff]
    %v229 = vld [vmem:[#allocation3 + $0x18] sm:$0xff]
    %v230 = vld [vmem:[#allocation3 + $0x20] sm:$0xff]
    %v231 = vld [vmem:[#allocation3 + $0x28] sm:$0xff]
    %v232 = vld [vmem:[#allocation3 + $0x30] sm:$0xff]
    %v233 = vld [vmem:[#allocation3 + $0x38] sm:$0xff]
    %v234 = vld [vmem:[#allocation3 + $0x40] sm:$0xff]
    %v235 = vld [vmem:[#allocation3 + $0x48] sm:$0xff]
    %v236 = vld [vmem:[#allocation3 + $0x50] sm:$0xff]
    %v237 = vld [vmem:[#allocation3 + $0x58] sm:$0xff]
    %v238 = vld [vmem:[#allocation3 + $0x60] sm:$0xff]
    %v239 = vld [vmem:[#allocation3 + $0x68] sm:$0xff]
    %v240 = vld [vmem:[#allocation3 + $0x70] sm:$0xff]
    %v241 = vld [vmem:[#allocation3 + $0x78] sm:$0xff]
    %v242 = vld [vmem:[#allocation2] ss:$8 sm:$0xf]
    %vm243 = vcmask 261120
    %v245 = vsel %vm243, 0.0, 0
    %247 = vmatprep.subr.mxu0 %v227
    %248 = vmatpush1.msra.mxu0 %v226
    %249 = vmatprep.subr.mxu0 %v231
    %250 = vmatpush1.msra.mxu0 %v230
    %251 = vmatprep.subr.mxu0 %v235
    %252 = vmatpush1.msra.mxu0 %v234
    %253 = vmatprep.subr.mxu0 %v239
    %254 = vmatpush1.msra.mxu0 %v238
    %255 = vmatprep.subr.mxu0 0.0
    %256 = vmatpush1.msra.mxu0 0.0
    %257 = vmatprep.subr.mxu0 0.0
    %258 = vmatpush1.msra.mxu0 0.0
    %259 = vmatprep.subr.mxu0 0.0
    %260 = vmatpush1.msra.mxu0 0.0
    %261 = vmatprep.subr.mxu0 0.0
    %262 = vmatpush1.msra.mxu0 0.0
    %263 = vmatprep.subr.mxu0 0.0
    %264 = vmatpush1.msra.mxu0 0.0
    %265 = vmatprep.subr.mxu0 0.0
    %266 = vmatpush1.msra.mxu0 0.0
    %267 = vmatprep.subr.mxu0 0.0
    %268 = vmatpush1.msra.mxu0 0.0
    %269 = vmatprep.subr.mxu0 0.0
    %270 = vmatpush1.msra.mxu0 0.0
    %271 = vmatprep.subr.mxu0 0.0
    %272 = vmatpush1.msra.mxu0 0.0
    %273 = vmatprep.subr.mxu0 0.0
    %274 = vmatpush1.msra.mxu0 0.0
    %275 = vmatprep.subr.mxu0 0.0
    %276 = vmatpush1.msra.mxu0 0.0
    %277 = vmatprep.subr.mxu0 0.0
    %278 = vmatpush1.msra.mxu0 0.0
    %279 = vmatprep.subr.mxu0 0.0
    %280 = vmatpush1.msra.mxu0 0.0
    %281 = vmatprep.subr.mxu0 0.0
    %282 = vmatpush1.msra.mxu0 0.0
    %283 = vmatprep.subr.mxu0 0.0
    %284 = vmatpush1.msra.mxu0 0.0
    %285 = vmatprep.subr.mxu0 0.0
    %286 = vmatpush1.msra.mxu0 0.0
    %287 = vmatprep.subr.mxu0 0.0
    %288 = vmatpush1.msra.mxu0 0.0
    %289 = vmatprep.subr.mxu0 0.0
    %290 = vmatpush1.msra.mxu0 0.0
    %291 = vmatprep.subr.mxu0 0.0
    %292 = vmatpush1.msra.mxu0 0.0
    %293 = vmatprep.subr.mxu0 0.0
    %294 = vmatpush1.msra.mxu0 0.0
    %295 = vmatprep.subr.mxu0 0.0
    %296 = vmatpush1.msra.mxu0 0.0
    %297 = vmatprep.subr.mxu0 0.0
    %298 = vmatpush1.msra.mxu0 0.0
    %299 = vmatprep.subr.mxu0 0.0
    %300 = vmatpush1.msra.mxu0 0.0
    %301 = vmatprep.subr.mxu0 0.0
    %302 = vmatpush1.msra.mxu0 0.0
    %303 = vmatprep.subr.mxu0 0.0
    %304 = vmatpush1.msra.mxu0 0.0
    %305 = vmatprep.subr.mxu0 0.0
    %306 = vmatpush1.msra.mxu0 0.0
    %307 = vmatprep.subr.mxu0 0.0
    %308 = vmatpush1.msra.mxu0 0.0
    %309 = vmatprep.subr.mxu0 0.0
    %310 = vmatpush1.msra.mxu0 0.0
    %311 = vmatprep.mubr.f32.mxu0 0.0
    %312 = vmatmul.mubr.f32.gmra.mrb[0].mxu0 %v245
    %v313 = vpop.f32.mrb[0].mxu0
    %v314 = vadd.f32 0.0, %v313
    %v315 = vpop.f32.mrb[0].mxu0
    %v316 = vadd.f32 0.0, %v315
    %317 = vdwg.mxu0
    %318 = vmatprep.subr.mxu0 %v229
    %319 = vmatpush1.msra.mxu0 %v228
    %320 = vmatprep.subr.mxu0 %v233
    %321 = vmatpush1.msra.mxu0 %v232
    %322 = vmatprep.subr.mxu0 %v237
    %323 = vmatpush1.msra.mxu0 %v236
    %324 = vmatprep.subr.mxu0 %v241
    %325 = vmatpush1.msra.mxu0 %v240
    %326 = vmatprep.subr.mxu0 0.0
    %327 = vmatpush1.msra.mxu0 0.0
    %328 = vmatprep.subr.mxu0 0.0
    %329 = vmatpush1.msra.mxu0 0.0
    %330 = vmatprep.subr.mxu0 0.0
    %331 = vmatpush1.msra.mxu0 0.0
    %332 = vmatprep.subr.mxu0 0.0
    %333 = vmatpush1.msra.mxu0 0.0
    %334 = vmatprep.subr.mxu0 0.0
    %335 = vmatpush1.msra.mxu0 0.0
    %336 = vmatprep.subr.mxu0 0.0
    %337 = vmatpush1.msra.mxu0 0.0
    %338 = vmatprep.subr.mxu0 0.0
    %339 = vmatpush1.msra.mxu0 0.0
    %340 = vmatprep.subr.mxu0 0.0
    %341 = vmatpush1.msra.mxu0 0.0
    %342 = vmatprep.subr.mxu0 0.0
    %343 = vmatpush1.msra.mxu0 0.0
    %344 = vmatprep.subr.mxu0 0.0
    %345 = vmatpush1.msra.mxu0 0.0
    %346 = vmatprep.subr.mxu0 0.0
    %347 = vmatpush1.msra.mxu0 0.0
    %348 = vmatprep.subr.mxu0 0.0
    %349 = vmatpush1.msra.mxu0 0.0
    %350 = vmatprep.subr.mxu0 0.0
    %351 = vmatpush1.msra.mxu0 0.0
    %352 = vmatprep.subr.mxu0 0.0
    %353 = vmatpush1.msra.mxu0 0.0
    %354 = vmatprep.subr.mxu0 0.0
    %355 = vmatpush1.msra.mxu0 0.0
    %356 = vmatprep.subr.mxu0 0.0
    %357 = vmatpush1.msra.mxu0 0.0
    %358 = vmatprep.subr.mxu0 0.0
    %359 = vmatpush1.msra.mxu0 0.0
    %360 = vmatprep.subr.mxu0 0.0
    %361 = vmatpush1.msra.mxu0 0.0
    %362 = vmatprep.subr.mxu0 0.0
    %363 = vmatpush1.msra.mxu0 0.0
    %364 = vmatprep.subr.mxu0 0.0
    %365 = vmatpush1.msra.mxu0 0.0
    %366 = vmatprep.subr.mxu0 0.0
    %367 = vmatpush1.msra.mxu0 0.0
    %368 = vmatprep.subr.mxu0 0.0
    %369 = vmatpush1.msra.mxu0 0.0
    %370 = vmatprep.subr.mxu0 0.0
    %371 = vmatpush1.msra.mxu0 0.0
    %372 = vmatprep.subr.mxu0 0.0
    %373 = vmatpush1.msra.mxu0 0.0
    %374 = vmatprep.subr.mxu0 0.0
    %375 = vmatpush1.msra.mxu0 0.0
    %376 = vmatprep.subr.mxu0 0.0
    %377 = vmatpush1.msra.mxu0 0.0
    %378 = vmatprep.subr.mxu0 0.0
    %379 = vmatpush1.msra.mxu0 0.0
    %380 = vmatprep.subr.mxu0 0.0
    %381 = vmatpush1.msra.mxu0 0.0
    %382 = vmatprep.mubr.f32.mxu0 0.0
    %383 = vmatmul.mubr.f32.gmra.mrb[0].mxu0 %v245
    %v384 = vpop.f32.mrb[0].mxu0
    %v385 = vadd.f32 0.0, %v384
    %v386 = vpop.f32.mrb[0].mxu0
    %v387 = vadd.f32 0.0, %v386
    %388 = vdwg.mxu0
    %v393 = vcombine.low %v314, %v316
    %v394 = vcombine.low %v385, %v387
    %v396 = vunpack.c.l.s4 1966171168
    %v397 = vunpack.c.0.s8 %v396
    %v398 = vlaneseq
    %v399 = vshrl.u32 %v398, 7
    %v400 = vsub.s32 %v397, %v399
    %v401 = vrot.slane %v393, %v400
    %v403 = vunpack.c.l.s4 1966171168
    %v404 = vunpack.c.0.s8 %v403
    %v405 = vlaneseq
    %v406 = vshrl.u32 %v405, 7
    %v407 = vsub.s32 %v404, %v406
    %v408 = vrot.slane %v394, %v407
    %v409 = vcombine.low %v401, %v408
    %v411 = vunpack.c.l.s4 1966171168
    %v412 = vunpack.c.0.s8 %v411
    %v413 = vlaneseq
    %v414 = vshrl.u32 %v413, 7
    %v415 = vsub.s32 %v412, %v414
    %v416 = vrot.slane %v409, %v415
    %v418 = vadd.f32 %v242, %v416
    %v419 = vtanh.pop %v418
    %v420 = vmul.f32 %v419, 0.5
    %v421 = vadd.f32 %v420, 0.5
    %v423 = vrot.slane %v419, 1
    %v425 = vmul.f32 %v423, 0.5
    %v426 = vadd.f32 %v425, 0.5
    %v427 = vrot.slane %v419, 3
    %v429 = vmul.f32 %v427, 0.5
    %v430 = vadd.f32 %v429, 0.5
    %v431 = vmul.f32 %v426, 0.0
    %v432 = vrot.slane %v419, 2
    %v434 = vmul.f32 %v421, %v432
    %v435 = vadd.f32 %v431, %v434
    %v436 = vtanh.pop %v435
    %v437 = vmul.f32 %v430, %v436
    %s438 = scalar_lea.vmem [#allocation2], 1
    %v439 = vld [vmem:[%s438] ss:$8 sm:$0xf]
    %v441 = vsel %vm243, %v437, 0
    %443 = vmatprep.subr.mxu0 %v227
    %444 = vmatpush1.msra.mxu0 %v226
    %445 = vmatprep.subr.mxu0 %v231
    %446 = vmatpush1.msra.mxu0 %v230
    %447 = vmatprep.subr.mxu0 %v235
    %448 = vmatpush1.msra.mxu0 %v234
    %449 = vmatprep.subr.mxu0 %v239
    %450 = vmatpush1.msra.mxu0 %v238
    %451 = vmatprep.subr.mxu0 0.0
    %452 = vmatpush1.msra.mxu0 0.0
    %453 = vmatprep.subr.mxu0 0.0
    %454 = vmatpush1.msra.mxu0 0.0
    %455 = vmatprep.subr.mxu0 0.0
    %456 = vmatpush1.msra.mxu0 0.0
    %457 = vmatprep.subr.mxu0 0.0
    %458 = vmatpush1.msra.mxu0 0.0
    %459 = vmatprep.subr.mxu0 0.0
    %460 = vmatpush1.msra.mxu0 0.0
    %461 = vmatprep.subr.mxu0 0.0
    %462 = vmatpush1.msra.mxu0 0.0
    %463 = vmatprep.subr.mxu0 0.0
    %464 = vmatpush1.msra.mxu0 0.0
    %465 = vmatprep.subr.mxu0 0.0
    %466 = vmatpush1.msra.mxu0 0.0
    %467 = vmatprep.subr.mxu0 0.0
    %468 = vmatpush1.msra.mxu0 0.0
    %469 = vmatprep.subr.mxu0 0.0
    %470 = vmatpush1.msra.mxu0 0.0
    %471 = vmatprep.subr.mxu0 0.0
    %472 = vmatpush1.msra.mxu0 0.0
    %473 = vmatprep.subr.mxu0 0.0
    %474 = vmatpush1.msra.mxu0 0.0
    %475 = vmatprep.subr.mxu0 0.0
    %476 = vmatpush1.msra.mxu0 0.0
    %477 = vmatprep.subr.mxu0 0.0
    %478 = vmatpush1.msra.mxu0 0.0
    %479 = vmatprep.subr.mxu0 0.0
    %480 = vmatpush1.msra.mxu0 0.0
    %481 = vmatprep.subr.mxu0 0.0
    %482 = vmatpush1.msra.mxu0 0.0
    %483 = vmatprep.subr.mxu0 0.0
    %484 = vmatpush1.msra.mxu0 0.0
    %485 = vmatprep.subr.mxu0 0.0
    %486 = vmatpush1.msra.mxu0 0.0
    %487 = vmatprep.subr.mxu0 0.0
    %488 = vmatpush1.msra.mxu0 0.0
    %489 = vmatprep.subr.mxu0 0.0
    %490 = vmatpush1.msra.mxu0 0.0
    %491 = vmatprep.subr.mxu0 0.0
    %492 = vmatpush1.msra.mxu0 0.0
    %493 = vmatprep.subr.mxu0 0.0
    %494 = vmatpush1.msra.mxu0 0.0
    %495 = vmatprep.subr.mxu0 0.0
    %496 = vmatpush1.msra.mxu0 0.0
    %497 = vmatprep.subr.mxu0 0.0
    %498 = vmatpush1.msra.mxu0 0.0
    %499 = vmatprep.subr.mxu0 0.0
    %500 = vmatpush1.msra.mxu0 0.0
    %501 = vmatprep.subr.mxu0 0.0
    %502 = vmatpush1.msra.mxu0 0.0
    %503 = vmatprep.subr.mxu0 0.0
    %504 = vmatpush1.msra.mxu0 0.0
    %505 = vmatprep.subr.mxu0 0.0
    %506 = vmatpush1.msra.mxu0 0.0
    %507 = vmatprep.mubr.f32.mxu0 0.0
    %508 = vmatmul.mubr.f32.gmra.mrb[0].mxu0 %v441
    %v509 = vpop.f32.mrb[0].mxu0
    %v510 = vadd.f32 0.0, %v509
    %v511 = vpop.f32.mrb[0].mxu0
    %v512 = vadd.f32 0.0, %v511
    %513 = vdwg.mxu0
    %514 = vmatprep.subr.mxu0 %v229
    %515 = vmatpush1.msra.mxu0 %v228
    %516 = vmatprep.subr.mxu0 %v233
    %517 = vmatpush1.msra.mxu0 %v232
    %518 = vmatprep.subr.mxu0 %v237
    %519 = vmatpush1.msra.mxu0 %v236
    %520 = vmatprep.subr.mxu0 %v241
    %521 = vmatpush1.msra.mxu0 %v240
    %522 = vmatprep.subr.mxu0 0.0
    %523 = vmatpush1.msra.mxu0 0.0
    %524 = vmatprep.subr.mxu0 0.0
    %525 = vmatpush1.msra.mxu0 0.0
    %526 = vmatprep.subr.mxu0 0.0
    %527 = vmatpush1.msra.mxu0 0.0
    %528 = vmatprep.subr.mxu0 0.0
    %529 = vmatpush1.msra.mxu0 0.0
    %530 = vmatprep.subr.mxu0 0.0
    %531 = vmatpush1.msra.mxu0 0.0
    %532 = vmatprep.subr.mxu0 0.0
    %533 = vmatpush1.msra.mxu0 0.0
    %534 = vmatprep.subr.mxu0 0.0
    %535 = vmatpush1.msra.mxu0 0.0
    %536 = vmatprep.subr.mxu0 0.0
    %537 = vmatpush1.msra.mxu0 0.0
    %538 = vmatprep.subr.mxu0 0.0
    %539 = vmatpush1.msra.mxu0 0.0
    %540 = vmatprep.subr.mxu0 0.0
    %541 = vmatpush1.msra.mxu0 0.0
    %542 = vmatprep.subr.mxu0 0.0
    %543 = vmatpush1.msra.mxu0 0.0
    %544 = vmatprep.subr.mxu0 0.0
    %545 = vmatpush1.msra.mxu0 0.0
    %546 = vmatprep.subr.mxu0 0.0
    %547 = vmatpush1.msra.mxu0 0.0
    %548 = vmatprep.subr.mxu0 0.0
    %549 = vmatpush1.msra.mxu0 0.0
    %550 = vmatprep.subr.mxu0 0.0
    %551 = vmatpush1.msra.mxu0 0.0
    %552 = vmatprep.subr.mxu0 0.0
    %553 = vmatpush1.msra.mxu0 0.0
    %554 = vmatprep.subr.mxu0 0.0
    %555 = vmatpush1.msra.mxu0 0.0
    %556 = vmatprep.subr.mxu0 0.0
    %557 = vmatpush1.msra.mxu0 0.0
    %558 = vmatprep.subr.mxu0 0.0
    %559 = vmatpush1.msra.mxu0 0.0
    %560 = vmatprep.subr.mxu0 0.0
    %561 = vmatpush1.msra.mxu0 0.0
    %562 = vmatprep.subr.mxu0 0.0
    %563 = vmatpush1.msra.mxu0 0.0
    %564 = vmatprep.subr.mxu0 0.0
    %565 = vmatpush1.msra.mxu0 0.0
    %566 = vmatprep.subr.mxu0 0.0
    %567 = vmatpush1.msra.mxu0 0.0
    %568 = vmatprep.subr.mxu0 0.0
    %569 = vmatpush1.msra.mxu0 0.0
    %570 = vmatprep.subr.mxu0 0.0
    %571 = vmatpush1.msra.mxu0 0.0
    %572 = vmatprep.subr.mxu0 0.0
    %573 = vmatpush1.msra.mxu0 0.0
    %574 = vmatprep.subr.mxu0 0.0
    %575 = vmatpush1.msra.mxu0 0.0
    %576 = vmatprep.subr.mxu0 0.0
    %577 = vmatpush1.msra.mxu0 0.0
    %578 = vmatprep.mubr.f32.mxu0 0.0
    %579 = vmatmul.mubr.f32.gmra.mrb[0].mxu0 %v441
    %v580 = vpop.f32.mrb[0].mxu0
    %v581 = vadd.f32 0.0, %v580
    %v582 = vpop.f32.mrb[0].mxu0
    %v583 = vadd.f32 0.0, %v582
    %584 = vdwg.mxu0
    %v589 = vcombine.low %v510, %v512
    %v590 = vcombine.low %v581, %v583
    %v592 = vunpack.c.l.s4 1966171168
    %v593 = vunpack.c.0.s8 %v592
    %v594 = vlaneseq
    %v595 = vshrl.u32 %v594, 7
    %v596 = vsub.s32 %v593, %v595
    %v597 = vrot.slane %v589, %v596
    %v599 = vunpack.c.l.s4 1966171168
    %v600 = vunpack.c.0.s8 %v599
    %v601 = vlaneseq
    %v602 = vshrl.u32 %v601, 7
    %v603 = vsub.s32 %v600, %v602
    %v604 = vrot.slane %v590, %v603
    %v605 = vcombine.low %v597, %v604
    %v607 = vunpack.c.l.s4 1966171168
    %v608 = vunpack.c.0.s8 %v607
    %v609 = vlaneseq
    %v610 = vshrl.u32 %v609, 7
    %v611 = vsub.s32 %v608, %v610
    %v612 = vrot.slane %v605, %v611
    %v614 = vadd.f32 %v439, %v612
    %v615 = vtanh.pop %v614
    %v616 = vmul.f32 %v615, 0.5
    %v617 = vadd.f32 %v616, 0.5
    %v619 = vrot.slane %v615, 1
    %v621 = vmul.f32 %v619, 0.5
    %v622 = vadd.f32 %v621, 0.5
    %v623 = vrot.slane %v615, 3
    %v625 = vmul.f32 %v623, 0.5
    %v626 = vadd.f32 %v625, 0.5
    %v627 = vmul.f32 %v622, %v435
    %v628 = vrot.slane %v615, 2
    %v630 = vmul.f32 %v617, %v628
    %v631 = vadd.f32 %v627, %v630
    %v632 = vtanh.pop %v631
    %v633 = vmul.f32 %v626, %v632
    %s634 = scalar_lea.vmem [#allocation2], 2
    %v635 = vld [vmem:[%s634] ss:$8 sm:$0xf]
    %v637 = vsel %vm243, %v633, 0
    %639 = vmatprep.subr.mxu0 %v227
    %640 = vmatpush1.msra.mxu0 %v226
    %641 = vmatprep.subr.mxu0 %v231
    %642 = vmatpush1.msra.mxu0 %v230
    %643 = vmatprep.subr.mxu0 %v235
    %644 = vmatpush1.msra.mxu0 %v234
    %645 = vmatprep.subr.mxu0 %v239
    %646 = vmatpush1.msra.mxu0 %v238
    %647 = vmatprep.subr.mxu0 0.0
    %648 = vmatpush1.msra.mxu0 0.0
    %649 = vmatprep.subr.mxu0 0.0
    %650 = vmatpush1.msra.mxu0 0.0
    %651 = vmatprep.subr.mxu0 0.0
    %652 = vmatpush1.msra.mxu0 0.0
    %653 = vmatprep.subr.mxu0 0.0
    %654 = vmatpush1.msra.mxu0 0.0
    %655 = vmatprep.subr.mxu0 0.0
    %656 = vmatpush1.msra.mxu0 0.0
    %657 = vmatprep.subr.mxu0 0.0
    %658 = vmatpush1.msra.mxu0 0.0
    %659 = vmatprep.subr.mxu0 0.0
    %660 = vmatpush1.msra.mxu0 0.0
    %661 = vmatprep.subr.mxu0 0.0
    %662 = vmatpush1.msra.mxu0 0.0
    %663 = vmatprep.subr.mxu0 0.0
    %664 = vmatpush1.msra.mxu0 0.0
    %665 = vmatprep.subr.mxu0 0.0
    %666 = vmatpush1.msra.mxu0 0.0
    %667 = vmatprep.subr.mxu0 0.0
    %668 = vmatpush1.msra.mxu0 0.0
    %669 = vmatprep.subr.mxu0 0.0
    %670 = vmatpush1.msra.mxu0 0.0
    %671 = vmatprep.subr.mxu0 0.0
    %672 = vmatpush1.msra.mxu0 0.0
    %673 = vmatprep.subr.mxu0 0.0
    %674 = vmatpush1.msra.mxu0 0.0
    %675 = vmatprep.subr.mxu0 0.0
    %676 = vmatpush1.msra.mxu0 0.0
    %677 = vmatprep.subr.mxu0 0.0
    %678 = vmatpush1.msra.mxu0 0.0
    %679 = vmatprep.subr.mxu0 0.0
    %680 = vmatpush1.msra.mxu0 0.0
    %681 = vmatprep.subr.mxu0 0.0
    %682 = vmatpush1.msra.mxu0 0.0
    %683 = vmatprep.subr.mxu0 0.0
    %684 = vmatpush1.msra.mxu0 0.0
    %685 = vmatprep.subr.mxu0 0.0
    %686 = vmatpush1.msra.mxu0 0.0
    %687 = vmatprep.subr.mxu0 0.0
    %688 = vmatpush1.msra.mxu0 0.0
    %689 = vmatprep.subr.mxu0 0.0
    %690 = vmatpush1.msra.mxu0 0.0
    %691 = vmatprep.subr.mxu0 0.0
    %692 = vmatpush1.msra.mxu0 0.0
    %693 = vmatprep.subr.mxu0 0.0
    %694 = vmatpush1.msra.mxu0 0.0
    %695 = vmatprep.subr.mxu0 0.0
    %696 = vmatpush1.msra.mxu0 0.0
    %697 = vmatprep.subr.mxu0 0.0
    %698 = vmatpush1.msra.mxu0 0.0
    %699 = vmatprep.subr.mxu0 0.0
    %700 = vmatpush1.msra.mxu0 0.0
    %701 = vmatprep.subr.mxu0 0.0
    %702 = vmatpush1.msra.mxu0 0.0
    %703 = vmatprep.mubr.f32.mxu0 0.0
    %704 = vmatmul.mubr.f32.gmra.mrb[0].mxu0 %v637
    %v705 = vpop.f32.mrb[0].mxu0
    %v706 = vadd.f32 0.0, %v705
    %v707 = vpop.f32.mrb[0].mxu0
    %v708 = vadd.f32 0.0, %v707
    %709 = vdwg.mxu0
    %710 = vmatprep.subr.mxu0 %v229
    %711 = vmatpush1.msra.mxu0 %v228
    %712 = vmatprep.subr.mxu0 %v233
    %713 = vmatpush1.msra.mxu0 %v232
    %714 = vmatprep.subr.mxu0 %v237
    %715 = vmatpush1.msra.mxu0 %v236
    %716 = vmatprep.subr.mxu0 %v241
    %717 = vmatpush1.msra.mxu0 %v240
    %718 = vmatprep.subr.mxu0 0.0
    %719 = vmatpush1.msra.mxu0 0.0
    %720 = vmatprep.subr.mxu0 0.0
    %721 = vmatpush1.msra.mxu0 0.0
    %722 = vmatprep.subr.mxu0 0.0
    %723 = vmatpush1.msra.mxu0 0.0
    %724 = vmatprep.subr.mxu0 0.0
    %725 = vmatpush1.msra.mxu0 0.0
    %726 = vmatprep.subr.mxu0 0.0
    %727 = vmatpush1.msra.mxu0 0.0
    %728 = vmatprep.subr.mxu0 0.0
    %729 = vmatpush1.msra.mxu0 0.0
    %730 = vmatprep.subr.mxu0 0.0
    %731 = vmatpush1.msra.mxu0 0.0
    %732 = vmatprep.subr.mxu0 0.0
    %733 = vmatpush1.msra.mxu0 0.0
    %734 = vmatprep.subr.mxu0 0.0
    %735 = vmatpush1.msra.mxu0 0.0
    %736 = vmatprep.subr.mxu0 0.0
    %737 = vmatpush1.msra.mxu0 0.0
    %738 = vmatprep.subr.mxu0 0.0
    %739 = vmatpush1.msra.mxu0 0.0
    %740 = vmatprep.subr.mxu0 0.0
    %741 = vmatpush1.msra.mxu0 0.0
    %742 = vmatprep.subr.mxu0 0.0
    %743 = vmatpush1.msra.mxu0 0.0
    %744 = vmatprep.subr.mxu0 0.0
    %745 = vmatpush1.msra.mxu0 0.0
    %746 = vmatprep.subr.mxu0 0.0
    %747 = vmatpush1.msra.mxu0 0.0
    %748 = vmatprep.subr.mxu0 0.0
    %749 = vmatpush1.msra.mxu0 0.0
    %750 = vmatprep.subr.mxu0 0.0
    %751 = vmatpush1.msra.mxu0 0.0
    %752 = vmatprep.subr.mxu0 0.0
    %753 = vmatpush1.msra.mxu0 0.0
    %754 = vmatprep.subr.mxu0 0.0
    %755 = vmatpush1.msra.mxu0 0.0
    %756 = vmatprep.subr.mxu0 0.0
    %757 = vmatpush1.msra.mxu0 0.0
    %758 = vmatprep.subr.mxu0 0.0
    %759 = vmatpush1.msra.mxu0 0.0
    %760 = vmatprep.subr.mxu0 0.0
    %761 = vmatpush1.msra.mxu0 0.0
    %762 = vmatprep.subr.mxu0 0.0
    %763 = vmatpush1.msra.mxu0 0.0
    %764 = vmatprep.subr.mxu0 0.0
    %765 = vmatpush1.msra.mxu0 0.0
    %766 = vmatprep.subr.mxu0 0.0
    %767 = vmatpush1.msra.mxu0 0.0
    %768 = vmatprep.subr.mxu0 0.0
    %769 = vmatpush1.msra.mxu0 0.0
    %770 = vmatprep.subr.mxu0 0.0
    %771 = vmatpush1.msra.mxu0 0.0
    %772 = vmatprep.subr.mxu0 0.0
    %773 = vmatpush1.msra.mxu0 0.0
    %774 = vmatprep.mubr.f32.mxu0 0.0
    %775 = vmatmul.mubr.f32.gmra.mrb[0].mxu0 %v637
    %v776 = vpop.f32.mrb[0].mxu0
    %v777 = vadd.f32 0.0, %v776
    %v778 = vpop.f32.mrb[0].mxu0
    %v779 = vadd.f32 0.0, %v778
    %780 = vdwg.mxu0
    %v785 = vcombine.low %v706, %v708
    %v786 = vcombine.low %v777, %v779
    %v788 = vunpack.c.l.s4 1966171168
    %v789 = vunpack.c.0.s8 %v788
    %v790 = vlaneseq
    %v791 = vshrl.u32 %v790, 7
    %v792 = vsub.s32 %v789, %v791
    %v793 = vrot.slane %v785, %v792
    %v795 = vunpack.c.l.s4 1966171168
    %v796 = vunpack.c.0.s8 %v795
    %v797 = vlaneseq
    %v798 = vshrl.u32 %v797, 7
    %v799 = vsub.s32 %v796, %v798
    %v800 = vrot.slane %v786, %v799
    %v801 = vcombine.low %v793, %v800
    %v803 = vunpack.c.l.s4 1966171168
    %v804 = vunpack.c.0.s8 %v803
    %v805 = vlaneseq
    %v806 = vshrl.u32 %v805, 7
    %v807 = vsub.s32 %v804, %v806
    %v808 = vrot.slane %v801, %v807
    %v810 = vadd.f32 %v635, %v808
    %v811 = vtanh.pop %v810
    %v812 = vmul.f32 %v811, 0.5
    %v813 = vadd.f32 %v812, 0.5
    %v815 = vrot.slane %v811, 1
    %v817 = vmul.f32 %v815, 0.5
    %v818 = vadd.f32 %v817, 0.5
    %v819 = vrot.slane %v811, 3
    %v821 = vmul.f32 %v819, 0.5
    %v822 = vadd.f32 %v821, 0.5
    %v823 = vmul.f32 %v818, %v631
    %v824 = vrot.slane %v811, 2
    %v826 = vmul.f32 %v813, %v824
    %v827 = vadd.f32 %v823, %v826
    %v828 = vtanh.pop %v827
    %v829 = vmul.f32 %v822, %v828
    %s830 = scalar_lea.vmem [#allocation2], 3
    %v831 = vld [vmem:[%s830] ss:$8 sm:$0xf]
    %v833 = vsel %vm243, %v829, 0
    %835 = vmatprep.subr.mxu0 %v227
    %836 = vmatpush1.msra.mxu0 %v226
    %837 = vmatprep.subr.mxu0 %v231
    %838 = vmatpush1.msra.mxu0 %v230
    %839 = vmatprep.subr.mxu0 %v235
    %840 = vmatpush1.msra.mxu0 %v234
    %841 = vmatprep.subr.mxu0 %v239
    %842 = vmatpush1.msra.mxu0 %v238
    %843 = vmatprep.subr.mxu0 0.0
    %844 = vmatpush1.msra.mxu0 0.0
    %845 = vmatprep.subr.mxu0 0.0
    %846 = vmatpush1.msra.mxu0 0.0
    %847 = vmatprep.subr.mxu0 0.0
    %848 = vmatpush1.msra.mxu0 0.0
    %849 = vmatprep.subr.mxu0 0.0
    %850 = vmatpush1.msra.mxu0 0.0
    %851 = vmatprep.subr.mxu0 0.0
    %852 = vmatpush1.msra.mxu0 0.0
    %853 = vmatprep.subr.mxu0 0.0
    %854 = vmatpush1.msra.mxu0 0.0
    %855 = vmatprep.subr.mxu0 0.0
    %856 = vmatpush1.msra.mxu0 0.0
    %857 = vmatprep.subr.mxu0 0.0
    %858 = vmatpush1.msra.mxu0 0.0
    %859 = vmatprep.subr.mxu0 0.0
    %860 = vmatpush1.msra.mxu0 0.0
    %861 = vmatprep.subr.mxu0 0.0
    %862 = vmatpush1.msra.mxu0 0.0
    %863 = vmatprep.subr.mxu0 0.0
    %864 = vmatpush1.msra.mxu0 0.0
    %865 = vmatprep.subr.mxu0 0.0
    %866 = vmatpush1.msra.mxu0 0.0
    %867 = vmatprep.subr.mxu0 0.0
    %868 = vmatpush1.msra.mxu0 0.0
    %869 = vmatprep.subr.mxu0 0.0
    %870 = vmatpush1.msra.mxu0 0.0
    %871 = vmatprep.subr.mxu0 0.0
    %872 = vmatpush1.msra.mxu0 0.0
    %873 = vmatprep.subr.mxu0 0.0
    %874 = vmatpush1.msra.mxu0 0.0
    %875 = vmatprep.subr.mxu0 0.0
    %876 = vmatpush1.msra.mxu0 0.0
    %877 = vmatprep.subr.mxu0 0.0
    %878 = vmatpush1.msra.mxu0 0.0
    %879 = vmatprep.subr.mxu0 0.0
    %880 = vmatpush1.msra.mxu0 0.0
    %881 = vmatprep.subr.mxu0 0.0
    %882 = vmatpush1.msra.mxu0 0.0
    %883 = vmatprep.subr.mxu0 0.0
    %884 = vmatpush1.msra.mxu0 0.0
    %885 = vmatprep.subr.mxu0 0.0
    %886 = vmatpush1.msra.mxu0 0.0
    %887 = vmatprep.subr.mxu0 0.0
    %888 = vmatpush1.msra.mxu0 0.0
    %889 = vmatprep.subr.mxu0 0.0
    %890 = vmatpush1.msra.mxu0 0.0
    %891 = vmatprep.subr.mxu0 0.0
    %892 = vmatpush1.msra.mxu0 0.0
    %893 = vmatprep.subr.mxu0 0.0
    %894 = vmatpush1.msra.mxu0 0.0
    %895 = vmatprep.subr.mxu0 0.0
    %896 = vmatpush1.msra.mxu0 0.0
    %897 = vmatprep.subr.mxu0 0.0
    %898 = vmatpush1.msra.mxu0 0.0
    %899 = vmatprep.mubr.f32.mxu0 0.0
    %900 = vmatmul.mubr.f32.gmra.mrb[0].mxu0 %v833
    %v901 = vpop.f32.mrb[0].mxu0
    %v902 = vadd.f32 0.0, %v901
    %v903 = vpop.f32.mrb[0].mxu0
    %v904 = vadd.f32 0.0, %v903
    %905 = vdwg.mxu0
    %906 = vmatprep.subr.mxu0 %v229
    %907 = vmatpush1.msra.mxu0 %v228
    %908 = vmatprep.subr.mxu0 %v233
    %909 = vmatpush1.msra.mxu0 %v232
    %910 = vmatprep.subr.mxu0 %v237
    %911 = vmatpush1.msra.mxu0 %v236
    %912 = vmatprep.subr.mxu0 %v241
    %913 = vmatpush1.msra.mxu0 %v240
    %914 = vmatprep.subr.mxu0 0.0
    %915 = vmatpush1.msra.mxu0 0.0
    %916 = vmatprep.subr.mxu0 0.0
    %917 = vmatpush1.msra.mxu0 0.0
    %918 = vmatprep.subr.mxu0 0.0
    %919 = vmatpush1.msra.mxu0 0.0
    %920 = vmatprep.subr.mxu0 0.0
    %921 = vmatpush1.msra.mxu0 0.0
    %922 = vmatprep.subr.mxu0 0.0
    %923 = vmatpush1.msra.mxu0 0.0
    %924 = vmatprep.subr.mxu0 0.0
    %925 = vmatpush1.msra.mxu0 0.0
    %926 = vmatprep.subr.mxu0 0.0
    %927 = vmatpush1.msra.mxu0 0.0
    %928 = vmatprep.subr.mxu0 0.0
    %929 = vmatpush1.msra.mxu0 0.0
    %930 = vmatprep.subr.mxu0 0.0
    %931 = vmatpush1.msra.mxu0 0.0
    %932 = vmatprep.subr.mxu0 0.0
    %933 = vmatpush1.msra.mxu0 0.0
    %934 = vmatprep.subr.mxu0 0.0
    %935 = vmatpush1.msra.mxu0 0.0
    %936 = vmatprep.subr.mxu0 0.0
    %937 = vmatpush1.msra.mxu0 0.0
    %938 = vmatprep.subr.mxu0 0.0
    %939 = vmatpush1.msra.mxu0 0.0
    %940 = vmatprep.subr.mxu0 0.0
    %941 = vmatpush1.msra.mxu0 0.0
    %942 = vmatprep.subr.mxu0 0.0
    %943 = vmatpush1.msra.mxu0 0.0
    %944 = vmatprep.subr.mxu0 0.0
    %945 = vmatpush1.msra.mxu0 0.0
    %946 = vmatprep.subr.mxu0 0.0
    %947 = vmatpush1.msra.mxu0 0.0
    %948 = vmatprep.subr.mxu0 0.0
    %949 = vmatpush1.msra.mxu0 0.0
    %950 = vmatprep.subr.mxu0 0.0
    %951 = vmatpush1.msra.mxu0 0.0
    %952 = vmatprep.subr.mxu0 0.0
    %953 = vmatpush1.msra.mxu0 0.0
    %954 = vmatprep.subr.mxu0 0.0
    %955 = vmatpush1.msra.mxu0 0.0
    %956 = vmatprep.subr.mxu0 0.0
    %957 = vmatpush1.msra.mxu0 0.0
    %958 = vmatprep.subr.mxu0 0.0
    %959 = vmatpush1.msra.mxu0 0.0
    %960 = vmatprep.subr.mxu0 0.0
    %961 = vmatpush1.msra.mxu0 0.0
    %962 = vmatprep.subr.mxu0 0.0
    %963 = vmatpush1.msra.mxu0 0.0
    %964 = vmatprep.subr.mxu0 0.0
    %965 = vmatpush1.msra.mxu0 0.0
    %966 = vmatprep.subr.mxu0 0.0
    %967 = vmatpush1.msra.mxu0 0.0
    %968 = vmatprep.subr.mxu0 0.0
    %969 = vmatpush1.msra.mxu0 0.0
    %970 = vmatprep.mubr.f32.mxu0 0.0
    %971 = vmatmul.mubr.f32.gmra.mrb[0].mxu0 %v833
    %v972 = vpop.f32.mrb[0].mxu0
    %v973 = vadd.f32 0.0, %v972
    %v974 = vpop.f32.mrb[0].mxu0
    %v975 = vadd.f32 0.0, %v974
    %976 = vdwg.mxu0
    %v981 = vcombine.low %v902, %v904
    %v982 = vcombine.low %v973, %v975
    %v984 = vunpack.c.l.s4 1966171168
    %v985 = vunpack.c.0.s8 %v984
    %v986 = vlaneseq
    %v987 = vshrl.u32 %v986, 7
    %v988 = vsub.s32 %v985, %v987
    %v989 = vrot.slane %v981, %v988
    %v991 = vunpack.c.l.s4 1966171168
    %v992 = vunpack.c.0.s8 %v991
    %v993 = vlaneseq
    %v994 = vshrl.u32 %v993, 7
    %v995 = vsub.s32 %v992, %v994
    %v996 = vrot.slane %v982, %v995
    %v997 = vcombine.low %v989, %v996
    %v999 = vunpack.c.l.s4 1966171168
    %v1000 = vunpack.c.0.s8 %v999
    %v1001 = vlaneseq
    %v1002 = vshrl.u32 %v1001, 7
    %v1003 = vsub.s32 %v1000, %v1002
    %v1004 = vrot.slane %v997, %v1003
    %v1006 = vadd.f32 %v831, %v1004
    %v1007 = vtanh.pop %v1006
    %v1008 = vmul.f32 %v1007, 0.5
    %v1009 = vadd.f32 %v1008, 0.5
    %v1011 = vrot.slane %v1007, 1
    %v1013 = vmul.f32 %v1011, 0.5
    %v1014 = vadd.f32 %v1013, 0.5
    %v1015 = vrot.slane %v1007, 3
    %v1017 = vmul.f32 %v1015, 0.5
    %v1018 = vadd.f32 %v1017, 0.5
    %v1019 = vmul.f32 %v1014, %v827
    %v1020 = vrot.slane %v1007, 2
    %v1022 = vmul.f32 %v1009, %v1020
    %v1023 = vadd.f32 %v1019, %v1022
    %v1024 = vtanh.pop %v1023
    %v1025 = vmul.f32 %v1018, %v1024
    %s1026 = scalar_lea.vmem [#allocation2], 4
    %v1027 = vld [vmem:[%s1026] ss:$8 sm:$0xf]
    %v1029 = vsel %vm243, %v1025, 0
    %1031 = vmatprep.subr.mxu0 %v227
    %1032 = vmatpush1.msra.mxu0 %v226
    %1033 = vmatprep.subr.mxu0 %v231
    %1034 = vmatpush1.msra.mxu0 %v230
    %1035 = vmatprep.subr.mxu0 %v235
    %1036 = vmatpush1.msra.mxu0 %v234
    %1037 = vmatprep.subr.mxu0 %v239
    %1038 = vmatpush1.msra.mxu0 %v238
    %1039 = vmatprep.subr.mxu0 0.0
    %1040 = vmatpush1.msra.mxu0 0.0
    %1041 = vmatprep.subr.mxu0 0.0
    %1042 = vmatpush1.msra.mxu0 0.0
    %1043 = vmatprep.subr.mxu0 0.0
    %1044 = vmatpush1.msra.mxu0 0.0
    %1045 = vmatprep.subr.mxu0 0.0
    %1046 = vmatpush1.msra.mxu0 0.0
    %1047 = vmatprep.subr.mxu0 0.0
    %1048 = vmatpush1.msra.mxu0 0.0
    %1049 = vmatprep.subr.mxu0 0.0
    %1050 = vmatpush1.msra.mxu0 0.0
    %1051 = vmatprep.subr.mxu0 0.0
    %1052 = vmatpush1.msra.mxu0 0.0
    %1053 = vmatprep.subr.mxu0 0.0
    %1054 = vmatpush1.msra.mxu0 0.0
    %1055 = vmatprep.subr.mxu0 0.0
    %1056 = vmatpush1.msra.mxu0 0.0
    %1057 = vmatprep.subr.mxu0 0.0
    %1058 = vmatpush1.msra.mxu0 0.0
    %1059 = vmatprep.subr.mxu0 0.0
    %1060 = vmatpush1.msra.mxu0 0.0
    %1061 = vmatprep.subr.mxu0 0.0
    %1062 = vmatpush1.msra.mxu0 0.0
    %1063 = vmatprep.subr.mxu0 0.0
    %1064 = vmatpush1.msra.mxu0 0.0
    %1065 = vmatprep.subr.mxu0 0.0
    %1066 = vmatpush1.msra.mxu0 0.0
    %1067 = vmatprep.subr.mxu0 0.0
    %1068 = vmatpush1.msra.mxu0 0.0
    %1069 = vmatprep.subr.mxu0 0.0
    %1070 = vmatpush1.msra.mxu0 0.0
    %1071 = vmatprep.subr.mxu0 0.0
    %1072 = vmatpush1.msra.mxu0 0.0
    %1073 = vmatprep.subr.mxu0 0.0
    %1074 = vmatpush1.msra.mxu0 0.0
    %1075 = vmatprep.subr.mxu0 0.0
    %1076 = vmatpush1.msra.mxu0 0.0
    %1077 = vmatprep.subr.mxu0 0.0
    %1078 = vmatpush1.msra.mxu0 0.0
    %1079 = vmatprep.subr.mxu0 0.0
    %1080 = vmatpush1.msra.mxu0 0.0
    %1081 = vmatprep.subr.mxu0 0.0
    %1082 = vmatpush1.msra.mxu0 0.0
    %1083 = vmatprep.subr.mxu0 0.0
    %1084 = vmatpush1.msra.mxu0 0.0
    %1085 = vmatprep.subr.mxu0 0.0
    %1086 = vmatpush1.msra.mxu0 0.0
    %1087 = vmatprep.subr.mxu0 0.0
    %1088 = vmatpush1.msra.mxu0 0.0
    %1089 = vmatprep.subr.mxu0 0.0
    %1090 = vmatpush1.msra.mxu0 0.0
    %1091 = vmatprep.subr.mxu0 0.0
    %1092 = vmatpush1.msra.mxu0 0.0
    %1093 = vmatprep.subr.mxu0 0.0
    %1094 = vmatpush1.msra.mxu0 0.0
    %1095 = vmatprep.mubr.f32.mxu0 0.0
    %1096 = vmatmul.mubr.f32.gmra.mrb[0].mxu0 %v1029
    %v1097 = vpop.f32.mrb[0].mxu0
    %v1098 = vadd.f32 0.0, %v1097
    %v1099 = vpop.f32.mrb[0].mxu0
    %v1100 = vadd.f32 0.0, %v1099
    %1101 = vdwg.mxu0
    %1102 = vmatprep.subr.mxu0 %v229
    %1103 = vmatpush1.msra.mxu0 %v228
    %1104 = vmatprep.subr.mxu0 %v233
    %1105 = vmatpush1.msra.mxu0 %v232
    %1106 = vmatprep.subr.mxu0 %v237
    %1107 = vmatpush1.msra.mxu0 %v236
    %1108 = vmatprep.subr.mxu0 %v241
    %1109 = vmatpush1.msra.mxu0 %v240
    %1110 = vmatprep.subr.mxu0 0.0
    %1111 = vmatpush1.msra.mxu0 0.0
    %1112 = vmatprep.subr.mxu0 0.0
    %1113 = vmatpush1.msra.mxu0 0.0
    %1114 = vmatprep.subr.mxu0 0.0
    %1115 = vmatpush1.msra.mxu0 0.0
    %1116 = vmatprep.subr.mxu0 0.0
    %1117 = vmatpush1.msra.mxu0 0.0
    %1118 = vmatprep.subr.mxu0 0.0
    %1119 = vmatpush1.msra.mxu0 0.0
    %1120 = vmatprep.subr.mxu0 0.0
    %1121 = vmatpush1.msra.mxu0 0.0
    %1122 = vmatprep.subr.mxu0 0.0
    %1123 = vmatpush1.msra.mxu0 0.0
    %1124 = vmatprep.subr.mxu0 0.0
    %1125 = vmatpush1.msra.mxu0 0.0
    %1126 = vmatprep.subr.mxu0 0.0
    %1127 = vmatpush1.msra.mxu0 0.0
    %1128 = vmatprep.subr.mxu0 0.0
    %1129 = vmatpush1.msra.mxu0 0.0
    %1130 = vmatprep.subr.mxu0 0.0
    %1131 = vmatpush1.msra.mxu0 0.0
    %1132 = vmatprep.subr.mxu0 0.0
    %1133 = vmatpush1.msra.mxu0 0.0
    %1134 = vmatprep.subr.mxu0 0.0
    %1135 = vmatpush1.msra.mxu0 0.0
    %1136 = vmatprep.subr.mxu0 0.0
    %1137 = vmatpush1.msra.mxu0 0.0
    %1138 = vmatprep.subr.mxu0 0.0
    %1139 = vmatpush1.msra.mxu0 0.0
    %1140 = vmatprep.subr.mxu0 0.0
    %1141 = vmatpush1.msra.mxu0 0.0
    %1142 = vmatprep.subr.mxu0 0.0
    %1143 = vmatpush1.msra.mxu0 0.0
    %1144 = vmatprep.subr.mxu0 0.0
    %1145 = vmatpush1.msra.mxu0 0.0
    %1146 = vmatprep.subr.mxu0 0.0
    %1147 = vmatpush1.msra.mxu0 0.0
    %1148 = vmatprep.subr.mxu0 0.0
    %1149 = vmatpush1.msra.mxu0 0.0
    %1150 = vmatprep.subr.mxu0 0.0
    %1151 = vmatpush1.msra.mxu0 0.0
    %1152 = vmatprep.subr.mxu0 0.0
    %1153 = vmatpush1.msra.mxu0 0.0
    %1154 = vmatprep.subr.mxu0 0.0
    %1155 = vmatpush1.msra.mxu0 0.0
    %1156 = vmatprep.subr.mxu0 0.0
    %1157 = vmatpush1.msra.mxu0 0.0
    %1158 = vmatprep.subr.mxu0 0.0
    %1159 = vmatpush1.msra.mxu0 0.0
    %1160 = vmatprep.subr.mxu0 0.0
    %1161 = vmatpush1.msra.mxu0 0.0
    %1162 = vmatprep.subr.mxu0 0.0
    %1163 = vmatpush1.msra.mxu0 0.0
    %1164 = vmatprep.subr.mxu0 0.0
    %1165 = vmatpush1.msra.mxu0 0.0
    %1166 = vmatprep.mubr.f32.mxu0 0.0
    %1167 = vmatmul.mubr.f32.gmra.mrb[0].mxu0 %v1029
    %v1168 = vpop.f32.mrb[0].mxu0
    %v1169 = vadd.f32 0.0, %v1168
    %v1170 = vpop.f32.mrb[0].mxu0
    %v1171 = vadd.f32 0.0, %v1170
    %1172 = vdwg.mxu0
    %v1177 = vcombine.low %v1098, %v1100
    %v1178 = vcombine.low %v1169, %v1171
    %v1180 = vunpack.c.l.s4 1966171168
    %v1181 = vunpack.c.0.s8 %v1180
    %v1182 = vlaneseq
    %v1183 = vshrl.u32 %v1182, 7
    %v1184 = vsub.s32 %v1181, %v1183
    %v1185 = vrot.slane %v1177, %v1184
    %v1187 = vunpack.c.l.s4 1966171168
    %v1188 = vunpack.c.0.s8 %v1187
    %v1189 = vlaneseq
    %v1190 = vshrl.u32 %v1189, 7
    %v1191 = vsub.s32 %v1188, %v1190
    %v1192 = vrot.slane %v1178, %v1191
    %v1193 = vcombine.low %v1185, %v1192
    %v1195 = vunpack.c.l.s4 1966171168
    %v1196 = vunpack.c.0.s8 %v1195
    %v1197 = vlaneseq
    %v1198 = vshrl.u32 %v1197, 7
    %v1199 = vsub.s32 %v1196, %v1198
    %v1200 = vrot.slane %v1193, %v1199
    %v1202 = vadd.f32 %v1027, %v1200
    %v1203 = vtanh.pop %v1202
    %v1204 = vmul.f32 %v1203, 0.5
    %v1205 = vadd.f32 %v1204, 0.5
    %v1207 = vrot.slane %v1203, 1
    %v1209 = vmul.f32 %v1207, 0.5
    %v1210 = vadd.f32 %v1209, 0.5
    %v1211 = vrot.slane %v1203, 3
    %v1213 = vmul.f32 %v1211, 0.5
    %v1214 = vadd.f32 %v1213, 0.5
    %v1215 = vmul.f32 %v1210, %v1023
    %v1216 = vrot.slane %v1203, 2
    %v1218 = vmul.f32 %v1205, %v1216
    %v1219 = vadd.f32 %v1215, %v1218
    %v1220 = vtanh.pop %v1219
    %v1221 = vmul.f32 %v1214, %v1220
    %s1222 = scalar_lea.vmem [#allocation2], 5
    %v1223 = vld [vmem:[%s1222] ss:$8 sm:$0xf]
    %v1225 = vsel %vm243, %v1221, 0
    %1227 = vmatprep.subr.mxu0 %v227
    %1228 = vmatpush1.msra.mxu0 %v226
    %1229 = vmatprep.subr.mxu0 %v231
    %1230 = vmatpush1.msra.mxu0 %v230
    %1231 = vmatprep.subr.mxu0 %v235
    %1232 = vmatpush1.msra.mxu0 %v234
    %1233 = vmatprep.subr.mxu0 %v239
    %1234 = vmatpush1.msra.mxu0 %v238
    %1235 = vmatprep.subr.mxu0 0.0
    %1236 = vmatpush1.msra.mxu0 0.0
    %1237 = vmatprep.subr.mxu0 0.0
    %1238 = vmatpush1.msra.mxu0 0.0
    %1239 = vmatprep.subr.mxu0 0.0
    %1240 = vmatpush1.msra.mxu0 0.0
    %1241 = vmatprep.subr.mxu0 0.0
    %1242 = vmatpush1.msra.mxu0 0.0
    %1243 = vmatprep.subr.mxu0 0.0
    %1244 = vmatpush1.msra.mxu0 0.0
    %1245 = vmatprep.subr.mxu0 0.0
    %1246 = vmatpush1.msra.mxu0 0.0
    %1247 = vmatprep.subr.mxu0 0.0
    %1248 = vmatpush1.msra.mxu0 0.0
    %1249 = vmatprep.subr.mxu0 0.0
    %1250 = vmatpush1.msra.mxu0 0.0
    %1251 = vmatprep.subr.mxu0 0.0
    %1252 = vmatpush1.msra.mxu0 0.0
    %1253 = vmatprep.subr.mxu0 0.0
    %1254 = vmatpush1.msra.mxu0 0.0
    %1255 = vmatprep.subr.mxu0 0.0
    %1256 = vmatpush1.msra.mxu0 0.0
    %1257 = vmatprep.subr.mxu0 0.0
    %1258 = vmatpush1.msra.mxu0 0.0
    %1259 = vmatprep.subr.mxu0 0.0
    %1260 = vmatpush1.msra.mxu0 0.0
    %1261 = vmatprep.subr.mxu0 0.0
    %1262 = vmatpush1.msra.mxu0 0.0
    %1263 = vmatprep.subr.mxu0 0.0
    %1264 = vmatpush1.msra.mxu0 0.0
    %1265 = vmatprep.subr.mxu0 0.0
    %1266 = vmatpush1.msra.mxu0 0.0
    %1267 = vmatprep.subr.mxu0 0.0
    %1268 = vmatpush1.msra.mxu0 0.0
    %1269 = vmatprep.subr.mxu0 0.0
    %1270 = vmatpush1.msra.mxu0 0.0
    %1271 = vmatprep.subr.mxu0 0.0
    %1272 = vmatpush1.msra.mxu0 0.0
    %1273 = vmatprep.subr.mxu0 0.0
    %1274 = vmatpush1.msra.mxu0 0.0
    %1275 = vmatprep.subr.mxu0 0.0
    %1276 = vmatpush1.msra.mxu0 0.0
    %1277 = vmatprep.subr.mxu0 0.0
    %1278 = vmatpush1.msra.mxu0 0.0
    %1279 = vmatprep.subr.mxu0 0.0
    %1280 = vmatpush1.msra.mxu0 0.0
    %1281 = vmatprep.subr.mxu0 0.0
    %1282 = vmatpush1.msra.mxu0 0.0
    %1283 = vmatprep.subr.mxu0 0.0
    %1284 = vmatpush1.msra.mxu0 0.0
    %1285 = vmatprep.subr.mxu0 0.0
    %1286 = vmatpush1.msra.mxu0 0.0
    %1287 = vmatprep.subr.mxu0 0.0
    %1288 = vmatpush1.msra.mxu0 0.0
    %1289 = vmatprep.subr.mxu0 0.0
    %1290 = vmatpush1.msra.mxu0 0.0
    %1291 = vmatprep.mubr.f32.mxu0 0.0
    %1292 = vmatmul.mubr.f32.gmra.mrb[0].mxu0 %v1225
    %v1293 = vpop.f32.mrb[0].mxu0
    %v1294 = vadd.f32 0.0, %v1293
    %v1295 = vpop.f32.mrb[0].mxu0
    %v1296 = vadd.f32 0.0, %v1295
    %1297 = vdwg.mxu0
    %1298 = vmatprep.subr.mxu0 %v229
    %1299 = vmatpush1.msra.mxu0 %v228
    %1300 = vmatprep.subr.mxu0 %v233
    %1301 = vmatpush1.msra.mxu0 %v232
    %1302 = vmatprep.subr.mxu0 %v237
    %1303 = vmatpush1.msra.mxu0 %v236
    %1304 = vmatprep.subr.mxu0 %v241
    %1305 = vmatpush1.msra.mxu0 %v240
    %1306 = vmatprep.subr.mxu0 0.0
    %1307 = vmatpush1.msra.mxu0 0.0
    %1308 = vmatprep.subr.mxu0 0.0
    %1309 = vmatpush1.msra.mxu0 0.0
    %1310 = vmatprep.subr.mxu0 0.0
    %1311 = vmatpush1.msra.mxu0 0.0
    %1312 = vmatprep.subr.mxu0 0.0
    %1313 = vmatpush1.msra.mxu0 0.0
    %1314 = vmatprep.subr.mxu0 0.0
    %1315 = vmatpush1.msra.mxu0 0.0
    %1316 = vmatprep.subr.mxu0 0.0
    %1317 = vmatpush1.msra.mxu0 0.0
    %1318 = vmatprep.subr.mxu0 0.0
    %1319 = vmatpush1.msra.mxu0 0.0
    %1320 = vmatprep.subr.mxu0 0.0
    %1321 = vmatpush1.msra.mxu0 0.0
    %1322 = vmatprep.subr.mxu0 0.0
    %1323 = vmatpush1.msra.mxu0 0.0
    %1324 = vmatprep.subr.mxu0 0.0
    %1325 = vmatpush1.msra.mxu0 0.0
    %1326 = vmatprep.subr.mxu0 0.0
    %1327 = vmatpush1.msra.mxu0 0.0
    %1328 = vmatprep.subr.mxu0 0.0
    %1329 = vmatpush1.msra.mxu0 0.0
    %1330 = vmatprep.subr.mxu0 0.0
    %1331 = vmatpush1.msra.mxu0 0.0
    %1332 = vmatprep.subr.mxu0 0.0
    %1333 = vmatpush1.msra.mxu0 0.0
    %1334 = vmatprep.subr.mxu0 0.0
    %1335 = vmatpush1.msra.mxu0 0.0
    %1336 = vmatprep.subr.mxu0 0.0
    %1337 = vmatpush1.msra.mxu0 0.0
    %1338 = vmatprep.subr.mxu0 0.0
    %1339 = vmatpush1.msra.mxu0 0.0
    %1340 = vmatprep.subr.mxu0 0.0
    %1341 = vmatpush1.msra.mxu0 0.0
    %1342 = vmatprep.subr.mxu0 0.0
    %1343 = vmatpush1.msra.mxu0 0.0
    %1344 = vmatprep.subr.mxu0 0.0
    %1345 = vmatpush1.msra.mxu0 0.0
    %1346 = vmatprep.subr.mxu0 0.0
    %1347 = vmatpush1.msra.mxu0 0.0
    %1348 = vmatprep.subr.mxu0 0.0
    %1349 = vmatpush1.msra.mxu0 0.0
    %1350 = vmatprep.subr.mxu0 0.0
    %1351 = vmatpush1.msra.mxu0 0.0
    %1352 = vmatprep.subr.mxu0 0.0
    %1353 = vmatpush1.msra.mxu0 0.0
    %1354 = vmatprep.subr.mxu0 0.0
    %1355 = vmatpush1.msra.mxu0 0.0
    %1356 = vmatprep.subr.mxu0 0.0
    %1357 = vmatpush1.msra.mxu0 0.0
    %1358 = vmatprep.subr.mxu0 0.0
    %1359 = vmatpush1.msra.mxu0 0.0
    %1360 = vmatprep.subr.mxu0 0.0
    %1361 = vmatpush1.msra.mxu0 0.0
    %1362 = vmatprep.mubr.f32.mxu0 0.0
    %1363 = vmatmul.mubr.f32.gmra.mrb[0].mxu0 %v1225
    %v1364 = vpop.f32.mrb[0].mxu0
    %v1365 = vadd.f32 0.0, %v1364
    %v1366 = vpop.f32.mrb[0].mxu0
    %v1367 = vadd.f32 0.0, %v1366
    %1368 = vdwg.mxu0
    %v1373 = vcombine.low %v1294, %v1296
    %v1374 = vcombine.low %v1365, %v1367
    %v1376 = vunpack.c.l.s4 1966171168
    %v1377 = vunpack.c.0.s8 %v1376
    %v1378 = vlaneseq
    %v1379 = vshrl.u32 %v1378, 7
    %v1380 = vsub.s32 %v1377, %v1379
    %v1381 = vrot.slane %v1373, %v1380
    %v1383 = vunpack.c.l.s4 1966171168
    %v1384 = vunpack.c.0.s8 %v1383
    %v1385 = vlaneseq
    %v1386 = vshrl.u32 %v1385, 7
    %v1387 = vsub.s32 %v1384, %v1386
    %v1388 = vrot.slane %v1374, %v1387
    %v1389 = vcombine.low %v1381, %v1388
    %v1391 = vunpack.c.l.s4 1966171168
    %v1392 = vunpack.c.0.s8 %v1391
    %v1393 = vlaneseq
    %v1394 = vshrl.u32 %v1393, 7
    %v1395 = vsub.s32 %v1392, %v1394
    %v1396 = vrot.slane %v1389, %v1395
    %v1398 = vadd.f32 %v1223, %v1396
    %v1399 = vtanh.pop %v1398
    %v1400 = vmul.f32 %v1399, 0.5
    %v1401 = vadd.f32 %v1400, 0.5
    %v1403 = vrot.slane %v1399, 1
    %v1405 = vmul.f32 %v1403, 0.5
    %v1406 = vadd.f32 %v1405, 0.5
    %v1407 = vrot.slane %v1399, 3
    %v1409 = vmul.f32 %v1407, 0.5
    %v1410 = vadd.f32 %v1409, 0.5
    %v1411 = vmul.f32 %v1406, %v1219
    %v1412 = vrot.slane %v1399, 2
    %v1414 = vmul.f32 %v1401, %v1412
    %v1415 = vadd.f32 %v1411, %v1414
    %v1416 = vtanh.pop %v1415
    %v1417 = vmul.f32 %v1410, %v1416
    %s1418 = scalar_lea.vmem [#allocation2], 6
    %v1419 = vld [vmem:[%s1418] ss:$8 sm:$0xf]
    %v1421 = vsel %vm243, %v1417, 0
    %1423 = vmatprep.subr.mxu0 %v227
    %1424 = vmatpush1.msra.mxu0 %v226
    %1425 = vmatprep.subr.mxu0 %v231
    %1426 = vmatpush1.msra.mxu0 %v230
    %1427 = vmatprep.subr.mxu0 %v235
    %1428 = vmatpush1.msra.mxu0 %v234
    %1429 = vmatprep.subr.mxu0 %v239
    %1430 = vmatpush1.msra.mxu0 %v238
    %1431 = vmatprep.subr.mxu0 0.0
    %1432 = vmatpush1.msra.mxu0 0.0
    %1433 = vmatprep.subr.mxu0 0.0
    %1434 = vmatpush1.msra.mxu0 0.0
    %1435 = vmatprep.subr.mxu0 0.0
    %1436 = vmatpush1.msra.mxu0 0.0
    %1437 = vmatprep.subr.mxu0 0.0
    %1438 = vmatpush1.msra.mxu0 0.0
    %1439 = vmatprep.subr.mxu0 0.0
    %1440 = vmatpush1.msra.mxu0 0.0
    %1441 = vmatprep.subr.mxu0 0.0
    %1442 = vmatpush1.msra.mxu0 0.0
    %1443 = vmatprep.subr.mxu0 0.0
    %1444 = vmatpush1.msra.mxu0 0.0
    %1445 = vmatprep.subr.mxu0 0.0
    %1446 = vmatpush1.msra.mxu0 0.0
    %1447 = vmatprep.subr.mxu0 0.0
    %1448 = vmatpush1.msra.mxu0 0.0
    %1449 = vmatprep.subr.mxu0 0.0
    %1450 = vmatpush1.msra.mxu0 0.0
    %1451 = vmatprep.subr.mxu0 0.0
    %1452 = vmatpush1.msra.mxu0 0.0
    %1453 = vmatprep.subr.mxu0 0.0
    %1454 = vmatpush1.msra.mxu0 0.0
    %1455 = vmatprep.subr.mxu0 0.0
    %1456 = vmatpush1.msra.mxu0 0.0
    %1457 = vmatprep.subr.mxu0 0.0
    %1458 = vmatpush1.msra.mxu0 0.0
    %1459 = vmatprep.subr.mxu0 0.0
    %1460 = vmatpush1.msra.mxu0 0.0
    %1461 = vmatprep.subr.mxu0 0.0
    %1462 = vmatpush1.msra.mxu0 0.0
    %1463 = vmatprep.subr.mxu0 0.0
    %1464 = vmatpush1.msra.mxu0 0.0
    %1465 = vmatprep.subr.mxu0 0.0
    %1466 = vmatpush1.msra.mxu0 0.0
    %1467 = vmatprep.subr.mxu0 0.0
    %1468 = vmatpush1.msra.mxu0 0.0
    %1469 = vmatprep.subr.mxu0 0.0
    %1470 = vmatpush1.msra.mxu0 0.0
    %1471 = vmatprep.subr.mxu0 0.0
    %1472 = vmatpush1.msra.mxu0 0.0
    %1473 = vmatprep.subr.mxu0 0.0
    %1474 = vmatpush1.msra.mxu0 0.0
    %1475 = vmatprep.subr.mxu0 0.0
    %1476 = vmatpush1.msra.mxu0 0.0
    %1477 = vmatprep.subr.mxu0 0.0
    %1478 = vmatpush1.msra.mxu0 0.0
    %1479 = vmatprep.subr.mxu0 0.0
    %1480 = vmatpush1.msra.mxu0 0.0
    %1481 = vmatprep.subr.mxu0 0.0
    %1482 = vmatpush1.msra.mxu0 0.0
    %1483 = vmatprep.subr.mxu0 0.0
    %1484 = vmatpush1.msra.mxu0 0.0
    %1485 = vmatprep.subr.mxu0 0.0
    %1486 = vmatpush1.msra.mxu0 0.0
    %1487 = vmatprep.mubr.f32.mxu0 0.0
    %1488 = vmatmul.mubr.f32.gmra.mrb[0].mxu0 %v1421
    %v1489 = vpop.f32.mrb[0].mxu0
    %v1490 = vadd.f32 0.0, %v1489
    %v1491 = vpop.f32.mrb[0].mxu0
    %v1492 = vadd.f32 0.0, %v1491
    %1493 = vdwg.mxu0
    %1494 = vmatprep.subr.mxu0 %v229
    %1495 = vmatpush1.msra.mxu0 %v228
    %1496 = vmatprep.subr.mxu0 %v233
    %1497 = vmatpush1.msra.mxu0 %v232
    %1498 = vmatprep.subr.mxu0 %v237
    %1499 = vmatpush1.msra.mxu0 %v236
    %1500 = vmatprep.subr.mxu0 %v241
    %1501 = vmatpush1.msra.mxu0 %v240
    %1502 = vmatprep.subr.mxu0 0.0
    %1503 = vmatpush1.msra.mxu0 0.0
    %1504 = vmatprep.subr.mxu0 0.0
    %1505 = vmatpush1.msra.mxu0 0.0
    %1506 = vmatprep.subr.mxu0 0.0
    %1507 = vmatpush1.msra.mxu0 0.0
    %1508 = vmatprep.subr.mxu0 0.0
    %1509 = vmatpush1.msra.mxu0 0.0
    %1510 = vmatprep.subr.mxu0 0.0
    %1511 = vmatpush1.msra.mxu0 0.0
    %1512 = vmatprep.subr.mxu0 0.0
    %1513 = vmatpush1.msra.mxu0 0.0
    %1514 = vmatprep.subr.mxu0 0.0
    %1515 = vmatpush1.msra.mxu0 0.0
    %1516 = vmatprep.subr.mxu0 0.0
    %1517 = vmatpush1.msra.mxu0 0.0
    %1518 = vmatprep.subr.mxu0 0.0
    %1519 = vmatpush1.msra.mxu0 0.0
    %1520 = vmatprep.subr.mxu0 0.0
    %1521 = vmatpush1.msra.mxu0 0.0
    %1522 = vmatprep.subr.mxu0 0.0
    %1523 = vmatpush1.msra.mxu0 0.0
    %1524 = vmatprep.subr.mxu0 0.0
    %1525 = vmatpush1.msra.mxu0 0.0
    %1526 = vmatprep.subr.mxu0 0.0
    %1527 = vmatpush1.msra.mxu0 0.0
    %1528 = vmatprep.subr.mxu0 0.0
    %1529 = vmatpush1.msra.mxu0 0.0
    %1530 = vmatprep.subr.mxu0 0.0
    %1531 = vmatpush1.msra.mxu0 0.0
    %1532 = vmatprep.subr.mxu0 0.0
    %1533 = vmatpush1.msra.mxu0 0.0
    %1534 = vmatprep.subr.mxu0 0.0
    %1535 = vmatpush1.msra.mxu0 0.0
    %1536 = vmatprep.subr.mxu0 0.0
    %1537 = vmatpush1.msra.mxu0 0.0
    %1538 = vmatprep.subr.mxu0 0.0
    %1539 = vmatpush1.msra.mxu0 0.0
    %1540 = vmatprep.subr.mxu0 0.0
    %1541 = vmatpush1.msra.mxu0 0.0
    %1542 = vmatprep.subr.mxu0 0.0
    %1543 = vmatpush1.msra.mxu0 0.0
    %1544 = vmatprep.subr.mxu0 0.0
    %1545 = vmatpush1.msra.mxu0 0.0
    %1546 = vmatprep.subr.mxu0 0.0
    %1547 = vmatpush1.msra.mxu0 0.0
    %1548 = vmatprep.subr.mxu0 0.0
    %1549 = vmatpush1.msra.mxu0 0.0
    %1550 = vmatprep.subr.mxu0 0.0
    %1551 = vmatpush1.msra.mxu0 0.0
    %1552 = vmatprep.subr.mxu0 0.0
    %1553 = vmatpush1.msra.mxu0 0.0
    %1554 = vmatprep.subr.mxu0 0.0
    %1555 = vmatpush1.msra.mxu0 0.0
    %1556 = vmatprep.subr.mxu0 0.0
    %1557 = vmatpush1.msra.mxu0 0.0
    %1558 = vmatprep.mubr.f32.mxu0 0.0
    %1559 = vmatmul.mubr.f32.gmra.mrb[0].mxu0 %v1421
    %v1560 = vpop.f32.mrb[0].mxu0
    %v1561 = vadd.f32 0.0, %v1560
    %v1562 = vpop.f32.mrb[0].mxu0
    %v1563 = vadd.f32 0.0, %v1562
    %1564 = vdwg.mxu0
    %v1569 = vcombine.low %v1490, %v1492
    %v1570 = vcombine.low %v1561, %v1563
    %v1572 = vunpack.c.l.s4 1966171168
    %v1573 = vunpack.c.0.s8 %v1572
    %v1574 = vlaneseq
    %v1575 = vshrl.u32 %v1574, 7
    %v1576 = vsub.s32 %v1573, %v1575
    %v1577 = vrot.slane %v1569, %v1576
    %v1579 = vunpack.c.l.s4 1966171168
    %v1580 = vunpack.c.0.s8 %v1579
    %v1581 = vlaneseq
    %v1582 = vshrl.u32 %v1581, 7
    %v1583 = vsub.s32 %v1580, %v1582
    %v1584 = vrot.slane %v1570, %v1583
    %v1585 = vcombine.low %v1577, %v1584
    %v1587 = vunpack.c.l.s4 1966171168
    %v1588 = vunpack.c.0.s8 %v1587
    %v1589 = vlaneseq
    %v1590 = vshrl.u32 %v1589, 7
    %v1591 = vsub.s32 %v1588, %v1590
    %v1592 = vrot.slane %v1585, %v1591
    %v1594 = vadd.f32 %v1419, %v1592
    %v1595 = vtanh.pop %v1594
    %v1596 = vmul.f32 %v1595, 0.5
    %v1597 = vadd.f32 %v1596, 0.5
    %v1599 = vrot.slane %v1595, 1
    %v1601 = vmul.f32 %v1599, 0.5
    %v1602 = vadd.f32 %v1601, 0.5
    %v1603 = vrot.slane %v1595, 3
    %v1605 = vmul.f32 %v1603, 0.5
    %v1606 = vadd.f32 %v1605, 0.5
    %v1607 = vmul.f32 %v1602, %v1415
    %v1608 = vrot.slane %v1595, 2
    %v1610 = vmul.f32 %v1597, %v1608
    %v1611 = vadd.f32 %v1607, %v1610
    %v1612 = vtanh.pop %v1611
    %v1613 = vmul.f32 %v1606, %v1612
    %s1614 = scalar_lea.vmem [#allocation2], 7
    %v1615 = vld [vmem:[%s1614] ss:$8 sm:$0xf]
    %v1617 = vsel %vm243, %v1613, 0
    %1619 = vmatprep.subr.mxu0 %v227
    %1620 = vmatpush1.msra.mxu0 %v226
    %1621 = vmatprep.subr.mxu0 %v231
    %1622 = vmatpush1.msra.mxu0 %v230
    %1623 = vmatprep.subr.mxu0 %v235
    %1624 = vmatpush1.msra.mxu0 %v234
    %1625 = vmatprep.subr.mxu0 %v239
    %1626 = vmatpush1.msra.mxu0 %v238
    %1627 = vmatprep.subr.mxu0 0.0
    %1628 = vmatpush1.msra.mxu0 0.0
    %1629 = vmatprep.subr.mxu0 0.0
    %1630 = vmatpush1.msra.mxu0 0.0
    %1631 = vmatprep.subr.mxu0 0.0
    %1632 = vmatpush1.msra.mxu0 0.0
    %1633 = vmatprep.subr.mxu0 0.0
    %1634 = vmatpush1.msra.mxu0 0.0
    %1635 = vmatprep.subr.mxu0 0.0
    %1636 = vmatpush1.msra.mxu0 0.0
    %1637 = vmatprep.subr.mxu0 0.0
    %1638 = vmatpush1.msra.mxu0 0.0
    %1639 = vmatprep.subr.mxu0 0.0
    %1640 = vmatpush1.msra.mxu0 0.0
    %1641 = vmatprep.subr.mxu0 0.0
    %1642 = vmatpush1.msra.mxu0 0.0
    %1643 = vmatprep.subr.mxu0 0.0
    %1644 = vmatpush1.msra.mxu0 0.0
    %1645 = vmatprep.subr.mxu0 0.0
    %1646 = vmatpush1.msra.mxu0 0.0
    %1647 = vmatprep.subr.mxu0 0.0
    %1648 = vmatpush1.msra.mxu0 0.0
    %1649 = vmatprep.subr.mxu0 0.0
    %1650 = vmatpush1.msra.mxu0 0.0
    %1651 = vmatprep.subr.mxu0 0.0
    %1652 = vmatpush1.msra.mxu0 0.0
    %1653 = vmatprep.subr.mxu0 0.0
    %1654 = vmatpush1.msra.mxu0 0.0
    %1655 = vmatprep.subr.mxu0 0.0
    %1656 = vmatpush1.msra.mxu0 0.0
    %1657 = vmatprep.subr.mxu0 0.0
    %1658 = vmatpush1.msra.mxu0 0.0
    %1659 = vmatprep.subr.mxu0 0.0
    %1660 = vmatpush1.msra.mxu0 0.0
    %1661 = vmatprep.subr.mxu0 0.0
    %1662 = vmatpush1.msra.mxu0 0.0
    %1663 = vmatprep.subr.mxu0 0.0
    %1664 = vmatpush1.msra.mxu0 0.0
    %1665 = vmatprep.subr.mxu0 0.0
    %1666 = vmatpush1.msra.mxu0 0.0
    %1667 = vmatprep.subr.mxu0 0.0
    %1668 = vmatpush1.msra.mxu0 0.0
    %1669 = vmatprep.subr.mxu0 0.0
    %1670 = vmatpush1.msra.mxu0 0.0
    %1671 = vmatprep.subr.mxu0 0.0
    %1672 = vmatpush1.msra.mxu0 0.0
    %1673 = vmatprep.subr.mxu0 0.0
    %1674 = vmatpush1.msra.mxu0 0.0
    %1675 = vmatprep.subr.mxu0 0.0
    %1676 = vmatpush1.msra.mxu0 0.0
    %1677 = vmatprep.subr.mxu0 0.0
    %1678 = vmatpush1.msra.mxu0 0.0
    %1679 = vmatprep.subr.mxu0 0.0
    %1680 = vmatpush1.msra.mxu0 0.0
    %1681 = vmatprep.subr.mxu0 0.0
    %1682 = vmatpush1.msra.mxu0 0.0
    %1683 = vmatprep.mubr.f32.mxu0 0.0
    %1684 = vmatmul.mubr.f32.gmra.mrb[0].mxu0 %v1617
    %v1685 = vpop.f32.mrb[0].mxu0
    %v1686 = vadd.f32 0.0, %v1685
    %v1687 = vpop.f32.mrb[0].mxu0
    %v1688 = vadd.f32 0.0, %v1687
    %1689 = vdwg.mxu0
    %1690 = vmatprep.subr.mxu0 %v229
    %1691 = vmatpush1.msra.mxu0 %v228
    %1692 = vmatprep.subr.mxu0 %v233
    %1693 = vmatpush1.msra.mxu0 %v232
    %1694 = vmatprep.subr.mxu0 %v237
    %1695 = vmatpush1.msra.mxu0 %v236
    %1696 = vmatprep.subr.mxu0 %v241
    %1697 = vmatpush1.msra.mxu0 %v240
    %1698 = vmatprep.subr.mxu0 0.0
    %1699 = vmatpush1.msra.mxu0 0.0
    %1700 = vmatprep.subr.mxu0 0.0
    %1701 = vmatpush1.msra.mxu0 0.0
    %1702 = vmatprep.subr.mxu0 0.0
    %1703 = vmatpush1.msra.mxu0 0.0
    %1704 = vmatprep.subr.mxu0 0.0
    %1705 = vmatpush1.msra.mxu0 0.0
    %1706 = vmatprep.subr.mxu0 0.0
    %1707 = vmatpush1.msra.mxu0 0.0
    %1708 = vmatprep.subr.mxu0 0.0
    %1709 = vmatpush1.msra.mxu0 0.0
    %1710 = vmatprep.subr.mxu0 0.0
    %1711 = vmatpush1.msra.mxu0 0.0
    %1712 = vmatprep.subr.mxu0 0.0
    %1713 = vmatpush1.msra.mxu0 0.0
    %1714 = vmatprep.subr.mxu0 0.0
    %1715 = vmatpush1.msra.mxu0 0.0
    %1716 = vmatprep.subr.mxu0 0.0
    %1717 = vmatpush1.msra.mxu0 0.0
    %1718 = vmatprep.subr.mxu0 0.0
    %1719 = vmatpush1.msra.mxu0 0.0
    %1720 = vmatprep.subr.mxu0 0.0
    %1721 = vmatpush1.msra.mxu0 0.0
    %1722 = vmatprep.subr.mxu0 0.0
    %1723 = vmatpush1.msra.mxu0 0.0
    %1724 = vmatprep.subr.mxu0 0.0
    %1725 = vmatpush1.msra.mxu0 0.0
    %1726 = vmatprep.subr.mxu0 0.0
    %1727 = vmatpush1.msra.mxu0 0.0
    %1728 = vmatprep.subr.mxu0 0.0
    %1729 = vmatpush1.msra.mxu0 0.0
    %1730 = vmatprep.subr.mxu0 0.0
    %1731 = vmatpush1.msra.mxu0 0.0
    %1732 = vmatprep.subr.mxu0 0.0
    %1733 = vmatpush1.msra.mxu0 0.0
    %1734 = vmatprep.subr.mxu0 0.0
    %1735 = vmatpush1.msra.mxu0 0.0
    %1736 = vmatprep.subr.mxu0 0.0
    %1737 = vmatpush1.msra.mxu0 0.0
    %1738 = vmatprep.subr.mxu0 0.0
    %1739 = vmatpush1.msra.mxu0 0.0
    %1740 = vmatprep.subr.mxu0 0.0
    %1741 = vmatpush1.msra.mxu0 0.0
    %1742 = vmatprep.subr.mxu0 0.0
    %1743 = vmatpush1.msra.mxu0 0.0
    %1744 = vmatprep.subr.mxu0 0.0
    %1745 = vmatpush1.msra.mxu0 0.0
    %1746 = vmatprep.subr.mxu0 0.0
    %1747 = vmatpush1.msra.mxu0 0.0
    %1748 = vmatprep.subr.mxu0 0.0
    %1749 = vmatpush1.msra.mxu0 0.0
    %1750 = vmatprep.subr.mxu0 0.0
    %1751 = vmatpush1.msra.mxu0 0.0
    %1752 = vmatprep.subr.mxu0 0.0
    %1753 = vmatpush1.msra.mxu0 0.0
    %1754 = vmatprep.mubr.f32.mxu0 0.0
    %1755 = vmatmul.mubr.f32.gmra.mrb[0].mxu0 %v1617
    %v1756 = vpop.f32.mrb[0].mxu0
    %v1757 = vadd.f32 0.0, %v1756
    %v1758 = vpop.f32.mrb[0].mxu0
    %v1759 = vadd.f32 0.0, %v1758
    %1760 = vdwg.mxu0
    %v1765 = vcombine.low %v1686, %v1688
    %v1766 = vcombine.low %v1757, %v1759
    %v1768 = vunpack.c.l.s4 1966171168
    %v1769 = vunpack.c.0.s8 %v1768
    %v1770 = vlaneseq
    %v1771 = vshrl.u32 %v1770, 7
    %v1772 = vsub.s32 %v1769, %v1771
    %v1773 = vrot.slane %v1765, %v1772
    %v1775 = vunpack.c.l.s4 1966171168
    %v1776 = vunpack.c.0.s8 %v1775
    %v1777 = vlaneseq
    %v1778 = vshrl.u32 %v1777, 7
    %v1779 = vsub.s32 %v1776, %v1778
    %v1780 = vrot.slane %v1766, %v1779
    %v1781 = vcombine.low %v1773, %v1780
    %v1783 = vunpack.c.l.s4 1966171168
    %v1784 = vunpack.c.0.s8 %v1783
    %v1785 = vlaneseq
    %v1786 = vshrl.u32 %v1785, 7
    %v1787 = vsub.s32 %v1784, %v1786
    %v1788 = vrot.slane %v1781, %v1787
    %v1790 = vadd.f32 %v1615, %v1788
    %v1791 = vtanh.pop %v1790
    %v1792 = vmul.f32 %v1791, 0.5
    %v1793 = vadd.f32 %v1792, 0.5
    %v1795 = vrot.slane %v1791, 1
    %v1797 = vmul.f32 %v1795, 0.5
    %v1798 = vadd.f32 %v1797, 0.5
    %v1799 = vrot.slane %v1791, 3
    %v1801 = vmul.f32 %v1799, 0.5
    %v1802 = vadd.f32 %v1801, 0.5
    %v1803 = vmul.f32 %v1798, %v1611
    %v1804 = vrot.slane %v1791, 2
    %v1806 = vmul.f32 %v1793, %v1804
    %v1807 = vadd.f32 %v1803, %v1806
    %v1808 = vtanh.pop %v1807
    %v1809 = vmul.f32 %v1802, %v1808
    %v1810 = vld [vmem:[%s4] sm:$0xff]
    %v1811 = vld [vmem:[%s4 + $0x8] sm:$0xff]
    %v1812 = vld [vmem:[%s4 + $0x10] sm:$0xff]
    %v1813 = vld [vmem:[%s4 + $0x18] sm:$0xff]
    %v1814 = vld [vmem:[%s5] sm:$0x1]
    %v1816 = vsel %vm243, %v1809, 0
    %1818 = vmatprep.subr.mxu0 0.0
    %1819 = vmatpush1.msra.mxu0 %v1810
    %1820 = vmatprep.subr.mxu0 0.0
    %1821 = vmatpush1.msra.mxu0 %v1811
    %1822 = vmatprep.subr.mxu0 0.0
    %1823 = vmatpush1.msra.mxu0 %v1812
    %1824 = vmatprep.subr.mxu0 0.0
    %1825 = vmatpush1.msra.mxu0 %v1813
    %1826 = vmatprep.subr.mxu0 0.0
    %1827 = vmatpush1.msra.mxu0 0.0
    %1828 = vmatprep.subr.mxu0 0.0
    %1829 = vmatpush1.msra.mxu0 0.0
    %1830 = vmatprep.subr.mxu0 0.0
    %1831 = vmatpush1.msra.mxu0 0.0
    %1832 = vmatprep.subr.mxu0 0.0
    %1833 = vmatpush1.msra.mxu0 0.0
    %1834 = vmatprep.subr.mxu0 0.0
    %1835 = vmatpush1.msra.mxu0 0.0
    %1836 = vmatprep.subr.mxu0 0.0
    %1837 = vmatpush1.msra.mxu0 0.0
    %1838 = vmatprep.subr.mxu0 0.0
    %1839 = vmatpush1.msra.mxu0 0.0
    %1840 = vmatprep.subr.mxu0 0.0
    %1841 = vmatpush1.msra.mxu0 0.0
    %1842 = vmatprep.subr.mxu0 0.0
    %1843 = vmatpush1.msra.mxu0 0.0
    %1844 = vmatprep.subr.mxu0 0.0
    %1845 = vmatpush1.msra.mxu0 0.0
    %1846 = vmatprep.subr.mxu0 0.0
    %1847 = vmatpush1.msra.mxu0 0.0
    %1848 = vmatprep.subr.mxu0 0.0
    %1849 = vmatpush1.msra.mxu0 0.0
    %1850 = vmatprep.subr.mxu0 0.0
    %1851 = vmatpush1.msra.mxu0 0.0
    %1852 = vmatprep.subr.mxu0 0.0
    %1853 = vmatpush1.msra.mxu0 0.0
    %1854 = vmatprep.subr.mxu0 0.0
    %1855 = vmatpush1.msra.mxu0 0.0
    %1856 = vmatprep.subr.mxu0 0.0
    %1857 = vmatpush1.msra.mxu0 0.0
    %1858 = vmatprep.subr.mxu0 0.0
    %1859 = vmatpush1.msra.mxu0 0.0
    %1860 = vmatprep.subr.mxu0 0.0
    %1861 = vmatpush1.msra.mxu0 0.0
    %1862 = vmatprep.subr.mxu0 0.0
    %1863 = vmatpush1.msra.mxu0 0.0
    %1864 = vmatprep.subr.mxu0 0.0
    %1865 = vmatpush1.msra.mxu0 0.0
    %1866 = vmatprep.subr.mxu0 0.0
    %1867 = vmatpush1.msra.mxu0 0.0
    %1868 = vmatprep.subr.mxu0 0.0
    %1869 = vmatpush1.msra.mxu0 0.0
    %1870 = vmatprep.subr.mxu0 0.0
    %1871 = vmatpush1.msra.mxu0 0.0
    %1872 = vmatprep.subr.mxu0 0.0
    %1873 = vmatpush1.msra.mxu0 0.0
    %1874 = vmatprep.subr.mxu0 0.0
    %1875 = vmatpush1.msra.mxu0 0.0
    %1876 = vmatprep.subr.mxu0 0.0
    %1877 = vmatpush1.msra.mxu0 0.0
    %1878 = vmatprep.subr.mxu0 0.0
    %1879 = vmatpush1.msra.mxu0 0.0
    %1880 = vmatprep.subr.mxu0 0.0
    %1881 = vmatpush1.msra.mxu0 0.0
    %1882 = vmatprep.mubr.f32.mxu0 0.0
    %1883 = vmatmul.mubr.f32.gmra.mrb[0].mxu0 %v1816
    %v1884 = vpop.f32.mrb[0].mxu0
    %v1885 = vadd.f32 %v1814, %v1884
    %v1886 = vpop.f32.mrb[0].mxu0
    %1887 = vdwg.mxu0
    %v1888 = vxor.u32 %v1885, 2147483648
    %v1889 = vmul.f32 %v1888, 1.442695
    %v1890 = vpow.pop %v1889
    %v1891 = vadd.f32 %v1890, 1.0
    %v1892 = vrcp.pop %v1891
    %v1893 = vmul.f32 1.0, %v1892
    %vm1894 = vcmask 122880
    %1895 = vst.msk [vmem:[#allocation6] sm:$0x1] %vm1894, %v1893
    // Predicated region
    $region30: #{tpu_custom_call.1} parent=1 // pred_check
      _
    $region31: #{tpu_custom_call.1} parent=1 // pred_check_branch
      %1897 = sbr.rel (0) target = $region33
    $region32: #{tpu_custom_call.1} parent=1 // pred_region
      %s1899 = ssub.s32 16, 16
      %1900 = vsyncadd [#allocation5], %s1899
      %s1902 = sshll.u32 [#allocation6], 4
      %s1903 = int_to_ptr.vmem [resolvable:$true] %s1902
      %1905 = dma.vmem_to_hbm [thread:$0]  %s1903, 16, %s6, [#allocation5]
    $region33: #{tpu_custom_call.1} parent=1 // pred_fallthru
      _
    // Predicated region
    $region34: #{tpu_custom_call.1} parent=1 // pred_check
      _
    $region35: #{tpu_custom_call.1} parent=1 // pred_check_branch
      %1907 = sbr.rel (0) target = $region37
    $region36: #{tpu_custom_call.1} parent=1 // pred_region
      %1908 = dma.done [#allocation5], 16
    $region37: #{tpu_custom_call.1} parent=1 // pred_fallthru
      _
    %1909 = vsyncpa [#allocation4], 1
    %1910 = vsyncpa [#allocation5], 1

</llo_original>
